<compile_context>
chip_gen: v6e
topology: v6e:2x2x1
jax: 0.10.0
libtpu: 0.0.40
codegen_flags: <defaults>
</compile_context>

<pallas_src>
from functools import partial
from types import SimpleNamespace

import numpy as np
import jax
import jax.numpy as jnp
from jax.experimental import pallas as pl
from jax.experimental.pallas import tpu as pltpu

EBD_DIM = 768

_VMEM = pl.BlockSpec(memory_space=pltpu.MemorySpace.VMEM)
_SMEM = pl.BlockSpec(memory_space=pltpu.MemorySpace.SMEM)


# ------------------------------ fused kernel ------------------------------ #

def _r2d2_kernel(scal_ref, ys_ref, yq_ref, xall_ref, xst_ref,
                 logp_ref, loss_ref, acc_ref, *, S, Q, way):
    """Fused R2D2 forward.

        G_all = [XS; XQ] @ XS^T                      (one bf16 MXU pass, f32 acc)
        A     = G_all[:S] + 10^lam * I
        B     = A^{-1} @ onehot(YS)                  (unrolled Gauss-Jordan, S static)
        pred  = 10^alpha * G_all[S:] @ B + beta      (reassociated chain)
        outputs: log_softmax(pred), mean CE loss, accuracy
    """
    reg = scal_ref[0]      # 10 ** lam
    scale = scal_ref[1]    # 10 ** alpha
    beta = scal_ref[2]

    # ---- one MXU pass: (S+Q, D) @ (D, S) -> (S+Q, S), f32 accumulation ----
    g_all = jnp.dot(xall_ref[...], xst_ref[...],
                    preferred_element_type=jnp.float32)
    gram = g_all[:S, :]          # XS @ XS^T   (S, S)   (row-8 tile-aligned slice)
    gq = g_all[S:, :]            # XQ @ XS^T   (Q, S)

    # ---- ridge system A = gram + reg * I ----
    row_a = jax.lax.broadcasted_iota(jnp.int32, (S, S), 0)
    col_a = jax.lax.broadcasted_iota(jnp.int32, (S, S), 1)
    a = gram + reg * (row_a == col_a).astype(jnp.float32)

    # ---- YS one-hot built in-kernel from int32 labels ----
    ys = ys_ref[...]                                              # (S, 1) int32
    col_b = jax.lax.broadcasted_iota(jnp.int32, (S, way), 1)
    b = (col_b == ys).astype(jnp.float32)                         # (S, way)

    # ---- unrolled Gauss-Jordan: b <- A^{-1} @ b ----
    # A is SPD and strongly diagonally dominant (diag ~ D + reg), so no pivoting.
    # Formulated with iota masks + keepdims reductions only (no unaligned slices).
    row_b = jax.lax.broadcasted_iota(jnp.int32, (S, way), 0)
    row_v = jax.lax.broadcasted_iota(jnp.int32, (S, 1), 0)
    col_r = jax.lax.broadcasted_iota(jnp.int32, (1, S), 1)
    for k in range(S):                                            # S is static -> fully unrolled
        arow = jnp.sum(jnp.where(row_a == k, a, 0.0), axis=0, keepdims=True)    # (1, S)
        brow = jnp.sum(jnp.where(row_b == k, b, 0.0), axis=0, keepdims=True)    # (1, way)
        pivot = jnp.sum(jnp.where(col_r == k, arow, 0.0), axis=1, keepdims=True)  # (1, 1)
        inv_p = 1.0 / pivot
        arow = arow * inv_p
        brow = brow * inv_p
        colk = jnp.sum(jnp.where(col_a == k, a, 0.0), axis=1, keepdims=True)    # (S, 1)
        fac = jnp.where(row_v == k, 0.0, colk)
        a = jnp.where(row_v == k, arow, a - fac * arow)
        b = jnp.where(row_v == k, brow, b - fac * brow)

    # ---- predictions: tiny (Q,S) @ (S,way) matmul, no (768, way) intermediate ----
    pred = scale * jnp.dot(gq, b, preferred_element_type=jnp.float32) + beta    # (Q, way)

    # ---- log-softmax ----
    m = jnp.max(pred, axis=-1, keepdims=True)
    lse = m + jnp.log(jnp.sum(jnp.exp(pred - m), axis=-1, keepdims=True))
    logp = pred - lse
    logp_ref[...] = logp

    # ---- mean cross-entropy (YQ one-hot built in-kernel) ----
    yq = yq_ref[...]                                              # (Q, 1) int32
    col_q = jax.lax.broadcasted_iota(jnp.int32, (Q, way), 1)
    yq_oh = (col_q == yq).astype(jnp.float32)
    nll = -jnp.sum(yq_oh * logp, axis=-1, keepdims=True)          # (Q, 1)
    loss_ref[...] = jnp.sum(nll, axis=0, keepdims=True) * (1.0 / Q)

    # ---- accuracy: first-index argmax (== torch.argmax) vs remapped labels ----
    colf = col_q.astype(jnp.float32)
    arg = jnp.min(jnp.where(pred >= m, colf, float(way)), axis=-1, keepdims=True)  # (Q, 1)
    correct = (arg == yq.astype(jnp.float32)).astype(jnp.float32)
    acc_ref[...] = jnp.sum(correct, axis=0, keepdims=True) * (1.0 / Q)


# ------------------------------ jitted glue -------------------------------- #

@partial(jax.jit, static_argnames=("way",))
def _forward_jit(params, XS, XQ, ys_new, yq_new, *, way):
    XS = XS.reshape(-1, EBD_DIM).astype(jnp.float32)
    XQ = XQ.reshape(-1, EBD_DIM).astype(jnp.float32)
    S, Q = XS.shape[0], XQ.shape[0]

    reg = 10.0 ** jnp.asarray(params["lam"], jnp.float32)
    scale = 10.0 ** jnp.asarray(params["alpha"], jnp.float32)
    beta = jnp.asarray(params["beta"], jnp.float32)
    scal = jnp.stack([reg, scale, beta]).astype(jnp.float32)       # (3,) -> SMEM

    # bf16 embeddings for the MXU (f32 accumulation inside the kernel).
    x_all = jnp.concatenate([XS, XQ], axis=0).astype(jnp.bfloat16)  # (S+Q, D)
    xst = XS.T.astype(jnp.bfloat16)                                 # (D, S)

    ys2 = ys_new.reshape(S, 1).astype(jnp.int32)
    yq2 = yq_new.reshape(Q, 1).astype(jnp.int32)

    logp, loss, acc = pl.pallas_call(
        partial(_r2d2_kernel, S=S, Q=Q, way=way),
        out_shape=(jax.ShapeDtypeStruct((Q, way), jnp.float32),
                   jax.ShapeDtypeStruct((1, 1), jnp.float32),
                   jax.ShapeDtypeStruct((1, 1), jnp.float32)),
        in_specs=[_SMEM, _VMEM, _VMEM, _VMEM, _VMEM],
        out_specs=(_VMEM, _VMEM, _VMEM),
    )(scal, ys2, yq2, x_all, xst)

    return acc[0, 0], loss[0, 0], logp


def dist_sign_forward(params, args, XS, YS, XQ, YQ):
    """Mirrors DistSign.forward -> R2D2.forward. Returns (acc, loss, logprobas).

    acc and loss are returned as device scalars (no host sync on the compute path).
    """
    # --- reidx_y: label remap + validation, host-side (mirrors the torch raises) ---
    ys_np = np.asarray(YS).reshape(-1)
    yq_np = np.asarray(YQ).reshape(-1)
    uniq_s, inv_s = np.unique(ys_np, return_inverse=True)
    uniq_q, inv_q = np.unique(yq_np, return_inverse=True)
    if uniq_s.shape[0] != uniq_q.shape[0]:
        raise ValueError("Support set classes are different from the query set")
    if uniq_s.shape[0] != args.way:
        raise ValueError("Support set classes are different from the number of ways")
    if not np.array_equal(uniq_s, uniq_q):
        raise ValueError("Support set classes are different from the query set classes")

    ys_new = jnp.asarray(inv_s, jnp.int32)
    yq_new = jnp.asarray(inv_q, jnp.int32)

    return _forward_jit(params, XS, XQ, ys_new, yq_new, way=args.way)


# ---------------------------------- main ----------------------------------- #

if __name__ == "__main__":
    args = SimpleNamespace(way=4, shot=2, query=4)

    # Deterministic parameter init (values from R2D2.__init__)
    params = {"lam": jnp.asarray(-1.0, jnp.float32),
              "alpha": jnp.asarray(0.0, jnp.float32),
              "beta": jnp.asarray(1.0, jnp.float32)}

    key = jax.random.PRNGKey(0)
    k_xs, k_xq = jax.random.split(key)

    # Inputs as DistSign would receive them (then .view(-1, 768) / .view(-1))
    XS = jax.random.normal(k_xs, (args.way, args.shot, EBD_DIM), jnp.float32)
    XQ = jax.random.normal(k_xq, (args.way, args.query, EBD_DIM), jnp.float32)
    classes = jnp.asarray([3, 7, 11, 19], jnp.int32)
    YS = jnp.broadcast_to(classes[:, None], (args.way, args.shot))
    YQ = jnp.broadcast_to(classes[:, None], (args.way, args.query))

    acc, loss, logprobas = dist_sign_forward(params, args, XS, YS, XQ, YQ)
    jax.block_until_ready((acc, loss, logprobas))

    assert logprobas.shape == (args.way * args.query, args.way)
    assert bool(jnp.isfinite(loss))
    assert 0.0 <= float(acc) <= 1.0
    print("KERNEL_OK")
</pallas_src>

<mosaic_0001>
module attributes {stable_mosaic.version = 11 : i64} {
  func.func @_r2d2_kernel(%arg0: memref<3xf32, #tpu.memory_space<smem>>, %arg1: memref<8x1xi32, #tpu.memory_space<vmem>>, %arg2: memref<16x1xi32, #tpu.memory_space<vmem>>, %arg3: memref<24x768xbf16, #tpu.memory_space<vmem>>, %arg4: memref<768x8xbf16, #tpu.memory_space<vmem>>, %arg5: memref<16x4xf32, #tpu.memory_space<vmem>>, %arg6: memref<1x1xf32, #tpu.memory_space<vmem>>, %arg7: memref<1x1xf32, #tpu.memory_space<vmem>>) attributes {dimension_semantics = [], scalar_prefetch = 0 : i64, scratch_operands = 0 : i64, tpu.core_type = #tpu.core_type<tc>} {
    %c0 = arith.constant 0 : index
    %0 = memref.load %arg0[%c0] : memref<3xf32, #tpu.memory_space<smem>>
    %c1 = arith.constant 1 : index
    %1 = memref.load %arg0[%c1] : memref<3xf32, #tpu.memory_space<smem>>
    %c2 = arith.constant 2 : index
    %2 = memref.load %arg0[%c2] : memref<3xf32, #tpu.memory_space<smem>>
    %c0_0 = arith.constant 0 : index
    %c0_1 = arith.constant 0 : index
    %3 = vector.load %arg3[%c0_0, %c0_1] : memref<24x768xbf16, #tpu.memory_space<vmem>>, vector<24x768xbf16>
    %c0_2 = arith.constant 0 : index
    %c0_3 = arith.constant 0 : index
    %4 = vector.load %arg4[%c0_2, %c0_3] : memref<768x8xbf16, #tpu.memory_space<vmem>>, vector<768x8xbf16>
    %cst = arith.constant dense<0.000000e+00> : vector<24x8xf32>
    %5 = tpu.matmul %3, %4, %cst {dimension_numbers = #tpu.dot_dimension_numbers<[1], [0], [0], [1], [0, 0, 1, 1], [], []>} : vector<24x768xbf16>, vector<768x8xbf16>, vector<24x8xf32> -> vector<24x8xf32>
    %6 = vector.extract_strided_slice %5 {offsets = [0, 0], sizes = [8, 8], strides = [1, 1]} : vector<24x8xf32> to vector<8x8xf32>
    %7 = vector.extract_strided_slice %5 {offsets = [8, 0], sizes = [16, 8], strides = [1, 1]} : vector<24x8xf32> to vector<16x8xf32>
    %8 = tpu.iota {dimensions = array<i32: 0>} : vector<8x8xi32>
    %9 = tpu.iota {dimensions = array<i32: 1>} : vector<8x8xi32>
    %10 = arith.cmpi eq, %8, %9 : vector<8x8xi32>
    %11 = arith.extui %10 : vector<8x8xi1> to vector<8x8xi32>
    %12 = arith.sitofp %11 : vector<8x8xi32> to vector<8x8xf32>
    %13 = vector.broadcast %0 : f32 to vector<8x8xf32>
    %14 = arith.mulf %13, %12 : vector<8x8xf32>
    %15 = arith.addf %6, %14 : vector<8x8xf32>
    %c0_4 = arith.constant 0 : index
    %c0_5 = arith.constant 0 : index
    %16 = vector.load %arg1[%c0_4, %c0_5] : memref<8x1xi32, #tpu.memory_space<vmem>>, vector<8x1xi32>
    %17 = tpu.iota {dimensions = array<i32: 1>} : vector<8x4xi32>
    %18 = vector.broadcast %16 : vector<8x1xi32> to vector<8x4xi32>
    %19 = arith.cmpi eq, %17, %18 : vector<8x4xi32>
    %20 = arith.extui %19 : vector<8x4xi1> to vector<8x4xi32>
    %21 = arith.sitofp %20 : vector<8x4xi32> to vector<8x4xf32>
    %22 = tpu.iota {dimensions = array<i32: 0>} : vector<8x4xi32>
    %23 = tpu.iota {dimensions = array<i32: 0>} : vector<8x1xi32>
    %24 = tpu.iota {dimensions = array<i32: 1>} : vector<1x8xi32>
    %c0_i32 = arith.constant 0 : i32
    %25 = vector.broadcast %c0_i32 : i32 to vector<8x8xi32>
    %26 = arith.cmpi eq, %8, %25 : vector<8x8xi32>
    %cst_6 = arith.constant 0.000000e+00 : f32
    %27 = vector.broadcast %cst_6 : f32 to vector<8x8xf32>
    %28 = arith.select %26, %15, %27 : vector<8x8xi1>, vector<8x8xf32>
    %cst_7 = arith.constant dense<0.000000e+00> : vector<8xf32>
    %29 = vector.multi_reduction <add>, %28, %cst_7 [0] : vector<8x8xf32> to vector<8xf32>
    %30 = vector.shape_cast %29 : vector<8xf32> to vector<1x8xf32>
    %c0_i32_8 = arith.constant 0 : i32
    %31 = vector.broadcast %c0_i32_8 : i32 to vector<8x4xi32>
    %32 = arith.cmpi eq, %22, %31 : vector<8x4xi32>
    %cst_9 = arith.constant 0.000000e+00 : f32
    %33 = vector.broadcast %cst_9 : f32 to vector<8x4xf32>
    %34 = arith.select %32, %21, %33 : vector<8x4xi1>, vector<8x4xf32>
    %cst_10 = arith.constant dense<0.000000e+00> : vector<4xf32>
    %35 = vector.multi_reduction <add>, %34, %cst_10 [0] : vector<8x4xf32> to vector<4xf32>
    %36 = vector.shape_cast %35 : vector<4xf32> to vector<1x4xf32>
    %c0_i32_11 = arith.constant 0 : i32
    %37 = vector.broadcast %c0_i32_11 : i32 to vector<1x8xi32>
    %38 = arith.cmpi eq, %24, %37 : vector<1x8xi32>
    %cst_12 = arith.constant 0.000000e+00 : f32
    %39 = vector.broadcast %cst_12 : f32 to vector<1x8xf32>
    %40 = arith.select %38, %30, %39 : vector<1x8xi1>, vector<1x8xf32>
    %cst_13 = arith.constant dense<0.000000e+00> : vector<1xf32>
    %41 = vector.multi_reduction <add>, %40, %cst_13 [1] : vector<1x8xf32> to vector<1xf32>
    %42 = vector.shape_cast %41 : vector<1xf32> to vector<1x1xf32>
    %cst_14 = arith.constant 1.000000e+00 : f32
    %43 = vector.broadcast %cst_14 : f32 to vector<1x1xf32>
    %44 = arith.divf %43, %42 : vector<1x1xf32>
    %45 = vector.broadcast %44 : vector<1x1xf32> to vector<1x8xf32>
    %46 = arith.mulf %30, %45 : vector<1x8xf32>
    %47 = vector.broadcast %44 : vector<1x1xf32> to vector<1x4xf32>
    %48 = arith.mulf %36, %47 : vector<1x4xf32>
    %c0_i32_15 = arith.constant 0 : i32
    %49 = vector.broadcast %c0_i32_15 : i32 to vector<8x8xi32>
    %50 = arith.cmpi eq, %9, %49 : vector<8x8xi32>
    %cst_16 = arith.constant 0.000000e+00 : f32
    %51 = vector.broadcast %cst_16 : f32 to vector<8x8xf32>
    %52 = arith.select %50, %15, %51 : vector<8x8xi1>, vector<8x8xf32>
    %cst_17 = arith.constant dense<0.000000e+00> : vector<8xf32>
    %53 = vector.multi_reduction <add>, %52, %cst_17 [1] : vector<8x8xf32> to vector<8xf32>
    %54 = vector.shape_cast %53 : vector<8xf32> to vector<8x1xf32>
    %c0_i32_18 = arith.constant 0 : i32
    %55 = vector.broadcast %c0_i32_18 : i32 to vector<8x1xi32>
    %56 = arith.cmpi eq, %23, %55 : vector<8x1xi32>
    %cst_19 = arith.constant 0.000000e+00 : f32
    %57 = vector.broadcast %cst_19 : f32 to vector<8x1xf32>
    %58 = arith.select %56, %57, %54 : vector<8x1xi1>, vector<8x1xf32>
    %c0_i32_20 = arith.constant 0 : i32
    %59 = vector.broadcast %c0_i32_20 : i32 to vector<8x1xi32>
    %60 = arith.cmpi eq, %23, %59 : vector<8x1xi32>
    %61 = vector.broadcast %58 : vector<8x1xf32> to vector<8x8xf32>
    %62 = vector.broadcast %46 : vector<1x8xf32> to vector<8x8xf32>
    %63 = arith.mulf %61, %62 : vector<8x8xf32>
    %64 = arith.subf %15, %63 : vector<8x8xf32>
    %65 = vector.shape_cast %60 : vector<8x1xi1> to vector<8x1xi1>
    %66 = vector.broadcast %65 : vector<8x1xi1> to vector<8x8xi1>
    %67 = vector.shape_cast %46 : vector<1x8xf32> to vector<1x8xf32>
    %68 = vector.broadcast %67 : vector<1x8xf32> to vector<8x8xf32>
    %69 = arith.select %66, %68, %64 : vector<8x8xi1>, vector<8x8xf32>
    %c0_i32_21 = arith.constant 0 : i32
    %70 = vector.broadcast %c0_i32_21 : i32 to vector<8x1xi32>
    %71 = arith.cmpi eq, %23, %70 : vector<8x1xi32>
    %72 = vector.broadcast %58 : vector<8x1xf32> to vector<8x4xf32>
    %73 = vector.broadcast %48 : vector<1x4xf32> to vector<8x4xf32>
    %74 = arith.mulf %72, %73 : vector<8x4xf32>
    %75 = arith.subf %21, %74 : vector<8x4xf32>
    %76 = vector.shape_cast %71 : vector<8x1xi1> to vector<8x1xi1>
    %77 = vector.broadcast %76 : vector<8x1xi1> to vector<8x4xi1>
    %78 = vector.shape_cast %48 : vector<1x4xf32> to vector<1x4xf32>
    %79 = vector.broadcast %78 : vector<1x4xf32> to vector<8x4xf32>
    %80 = arith.select %77, %79, %75 : vector<8x4xi1>, vector<8x4xf32>
    %c1_i32 = arith.constant 1 : i32
    %81 = vector.broadcast %c1_i32 : i32 to vector<8x8xi32>
    %82 = arith.cmpi eq, %8, %81 : vector<8x8xi32>
    %cst_22 = arith.constant 0.000000e+00 : f32
    %83 = vector.broadcast %cst_22 : f32 to vector<8x8xf32>
    %84 = arith.select %82, %69, %83 : vector<8x8xi1>, vector<8x8xf32>
    %cst_23 = arith.constant dense<0.000000e+00> : vector<8xf32>
    %85 = vector.multi_reduction <add>, %84, %cst_23 [0] : vector<8x8xf32> to vector<8xf32>
    %86 = vector.shape_cast %85 : vector<8xf32> to vector<1x8xf32>
    %c1_i32_24 = arith.constant 1 : i32
    %87 = vector.broadcast %c1_i32_24 : i32 to vector<8x4xi32>
    %88 = arith.cmpi eq, %22, %87 : vector<8x4xi32>
    %cst_25 = arith.constant 0.000000e+00 : f32
    %89 = vector.broadcast %cst_25 : f32 to vector<8x4xf32>
    %90 = arith.select %88, %80, %89 : vector<8x4xi1>, vector<8x4xf32>
    %cst_26 = arith.constant dense<0.000000e+00> : vector<4xf32>
    %91 = vector.multi_reduction <add>, %90, %cst_26 [0] : vector<8x4xf32> to vector<4xf32>
    %92 = vector.shape_cast %91 : vector<4xf32> to vector<1x4xf32>
    %c1_i32_27 = arith.constant 1 : i32
    %93 = vector.broadcast %c1_i32_27 : i32 to vector<1x8xi32>
    %94 = arith.cmpi eq, %24, %93 : vector<1x8xi32>
    %cst_28 = arith.constant 0.000000e+00 : f32
    %95 = vector.broadcast %cst_28 : f32 to vector<1x8xf32>
    %96 = arith.select %94, %86, %95 : vector<1x8xi1>, vector<1x8xf32>
    %cst_29 = arith.constant dense<0.000000e+00> : vector<1xf32>
    %97 = vector.multi_reduction <add>, %96, %cst_29 [1] : vector<1x8xf32> to vector<1xf32>
    %98 = vector.shape_cast %97 : vector<1xf32> to vector<1x1xf32>
    %cst_30 = arith.constant 1.000000e+00 : f32
    %99 = vector.broadcast %cst_30 : f32 to vector<1x1xf32>
    %100 = arith.divf %99, %98 : vector<1x1xf32>
    %101 = vector.broadcast %100 : vector<1x1xf32> to vector<1x8xf32>
    %102 = arith.mulf %86, %101 : vector<1x8xf32>
    %103 = vector.broadcast %100 : vector<1x1xf32> to vector<1x4xf32>
    %104 = arith.mulf %92, %103 : vector<1x4xf32>
    %c1_i32_31 = arith.constant 1 : i32
    %105 = vector.broadcast %c1_i32_31 : i32 to vector<8x8xi32>
    %106 = arith.cmpi eq, %9, %105 : vector<8x8xi32>
    %cst_32 = arith.constant 0.000000e+00 : f32
    %107 = vector.broadcast %cst_32 : f32 to vector<8x8xf32>
    %108 = arith.select %106, %69, %107 : vector<8x8xi1>, vector<8x8xf32>
    %cst_33 = arith.constant dense<0.000000e+00> : vector<8xf32>
    %109 = vector.multi_reduction <add>, %108, %cst_33 [1] : vector<8x8xf32> to vector<8xf32>
    %110 = vector.shape_cast %109 : vector<8xf32> to vector<8x1xf32>
    %c1_i32_34 = arith.constant 1 : i32
    %111 = vector.broadcast %c1_i32_34 : i32 to vector<8x1xi32>
    %112 = arith.cmpi eq, %23, %111 : vector<8x1xi32>
    %cst_35 = arith.constant 0.000000e+00 : f32
    %113 = vector.broadcast %cst_35 : f32 to vector<8x1xf32>
    %114 = arith.select %112, %113, %110 : vector<8x1xi1>, vector<8x1xf32>
    %c1_i32_36 = arith.constant 1 : i32
    %115 = vector.broadcast %c1_i32_36 : i32 to vector<8x1xi32>
    %116 = arith.cmpi eq, %23, %115 : vector<8x1xi32>
    %117 = vector.broadcast %114 : vector<8x1xf32> to vector<8x8xf32>
    %118 = vector.broadcast %102 : vector<1x8xf32> to vector<8x8xf32>
    %119 = arith.mulf %117, %118 : vector<8x8xf32>
    %120 = arith.subf %69, %119 : vector<8x8xf32>
    %121 = vector.shape_cast %116 : vector<8x1xi1> to vector<8x1xi1>
    %122 = vector.broadcast %121 : vector<8x1xi1> to vector<8x8xi1>
    %123 = vector.shape_cast %102 : vector<1x8xf32> to vector<1x8xf32>
    %124 = vector.broadcast %123 : vector<1x8xf32> to vector<8x8xf32>
    %125 = arith.select %122, %124, %120 : vector<8x8xi1>, vector<8x8xf32>
    %c1_i32_37 = arith.constant 1 : i32
    %126 = vector.broadcast %c1_i32_37 : i32 to vector<8x1xi32>
    %127 = arith.cmpi eq, %23, %126 : vector<8x1xi32>
    %128 = vector.broadcast %114 : vector<8x1xf32> to vector<8x4xf32>
    %129 = vector.broadcast %104 : vector<1x4xf32> to vector<8x4xf32>
    %130 = arith.mulf %128, %129 : vector<8x4xf32>
    %131 = arith.subf %80, %130 : vector<8x4xf32>
    %132 = vector.shape_cast %127 : vector<8x1xi1> to vector<8x1xi1>
    %133 = vector.broadcast %132 : vector<8x1xi1> to vector<8x4xi1>
    %134 = vector.shape_cast %104 : vector<1x4xf32> to vector<1x4xf32>
    %135 = vector.broadcast %134 : vector<1x4xf32> to vector<8x4xf32>
    %136 = arith.select %133, %135, %131 : vector<8x4xi1>, vector<8x4xf32>
    %c2_i32 = arith.constant 2 : i32
    %137 = vector.broadcast %c2_i32 : i32 to vector<8x8xi32>
    %138 = arith.cmpi eq, %8, %137 : vector<8x8xi32>
    %cst_38 = arith.constant 0.000000e+00 : f32
    %139 = vector.broadcast %cst_38 : f32 to vector<8x8xf32>
    %140 = arith.select %138, %125, %139 : vector<8x8xi1>, vector<8x8xf32>
    %cst_39 = arith.constant dense<0.000000e+00> : vector<8xf32>
    %141 = vector.multi_reduction <add>, %140, %cst_39 [0] : vector<8x8xf32> to vector<8xf32>
    %142 = vector.shape_cast %141 : vector<8xf32> to vector<1x8xf32>
    %c2_i32_40 = arith.constant 2 : i32
    %143 = vector.broadcast %c2_i32_40 : i32 to vector<8x4xi32>
    %144 = arith.cmpi eq, %22, %143 : vector<8x4xi32>
    %cst_41 = arith.constant 0.000000e+00 : f32
    %145 = vector.broadcast %cst_41 : f32 to vector<8x4xf32>
    %146 = arith.select %144, %136, %145 : vector<8x4xi1>, vector<8x4xf32>
    %cst_42 = arith.constant dense<0.000000e+00> : vector<4xf32>
    %147 = vector.multi_reduction <add>, %146, %cst_42 [0] : vector<8x4xf32> to vector<4xf32>
    %148 = vector.shape_cast %147 : vector<4xf32> to vector<1x4xf32>
    %c2_i32_43 = arith.constant 2 : i32
    %149 = vector.broadcast %c2_i32_43 : i32 to vector<1x8xi32>
    %150 = arith.cmpi eq, %24, %149 : vector<1x8xi32>
    %cst_44 = arith.constant 0.000000e+00 : f32
    %151 = vector.broadcast %cst_44 : f32 to vector<1x8xf32>
    %152 = arith.select %150, %142, %151 : vector<1x8xi1>, vector<1x8xf32>
    %cst_45 = arith.constant dense<0.000000e+00> : vector<1xf32>
    %153 = vector.multi_reduction <add>, %152, %cst_45 [1] : vector<1x8xf32> to vector<1xf32>
    %154 = vector.shape_cast %153 : vector<1xf32> to vector<1x1xf32>
    %cst_46 = arith.constant 1.000000e+00 : f32
    %155 = vector.broadcast %cst_46 : f32 to vector<1x1xf32>
    %156 = arith.divf %155, %154 : vector<1x1xf32>
    %157 = vector.broadcast %156 : vector<1x1xf32> to vector<1x8xf32>
    %158 = arith.mulf %142, %157 : vector<1x8xf32>
    %159 = vector.broadcast %156 : vector<1x1xf32> to vector<1x4xf32>
    %160 = arith.mulf %148, %159 : vector<1x4xf32>
    %c2_i32_47 = arith.constant 2 : i32
    %161 = vector.broadcast %c2_i32_47 : i32 to vector<8x8xi32>
    %162 = arith.cmpi eq, %9, %161 : vector<8x8xi32>
    %cst_48 = arith.constant 0.000000e+00 : f32
    %163 = vector.broadcast %cst_48 : f32 to vector<8x8xf32>
    %164 = arith.select %162, %125, %163 : vector<8x8xi1>, vector<8x8xf32>
    %cst_49 = arith.constant dense<0.000000e+00> : vector<8xf32>
    %165 = vector.multi_reduction <add>, %164, %cst_49 [1] : vector<8x8xf32> to vector<8xf32>
    %166 = vector.shape_cast %165 : vector<8xf32> to vector<8x1xf32>
    %c2_i32_50 = arith.constant 2 : i32
    %167 = vector.broadcast %c2_i32_50 : i32 to vector<8x1xi32>
    %168 = arith.cmpi eq, %23, %167 : vector<8x1xi32>
    %cst_51 = arith.constant 0.000000e+00 : f32
    %169 = vector.broadcast %cst_51 : f32 to vector<8x1xf32>
    %170 = arith.select %168, %169, %166 : vector<8x1xi1>, vector<8x1xf32>
    %c2_i32_52 = arith.constant 2 : i32
    %171 = vector.broadcast %c2_i32_52 : i32 to vector<8x1xi32>
    %172 = arith.cmpi eq, %23, %171 : vector<8x1xi32>
    %173 = vector.broadcast %170 : vector<8x1xf32> to vector<8x8xf32>
    %174 = vector.broadcast %158 : vector<1x8xf32> to vector<8x8xf32>
    %175 = arith.mulf %173, %174 : vector<8x8xf32>
    %176 = arith.subf %125, %175 : vector<8x8xf32>
    %177 = vector.shape_cast %172 : vector<8x1xi1> to vector<8x1xi1>
    %178 = vector.broadcast %177 : vector<8x1xi1> to vector<8x8xi1>
    %179 = vector.shape_cast %158 : vector<1x8xf32> to vector<1x8xf32>
    %180 = vector.broadcast %179 : vector<1x8xf32> to vector<8x8xf32>
    %181 = arith.select %178, %180, %176 : vector<8x8xi1>, vector<8x8xf32>
    %c2_i32_53 = arith.constant 2 : i32
    %182 = vector.broadcast %c2_i32_53 : i32 to vector<8x1xi32>
    %183 = arith.cmpi eq, %23, %182 : vector<8x1xi32>
    %184 = vector.broadcast %170 : vector<8x1xf32> to vector<8x4xf32>
    %185 = vector.broadcast %160 : vector<1x4xf32> to vector<8x4xf32>
    %186 = arith.mulf %184, %185 : vector<8x4xf32>
    %187 = arith.subf %136, %186 : vector<8x4xf32>
    %188 = vector.shape_cast %183 : vector<8x1xi1> to vector<8x1xi1>
    %189 = vector.broadcast %188 : vector<8x1xi1> to vector<8x4xi1>
    %190 = vector.shape_cast %160 : vector<1x4xf32> to vector<1x4xf32>
    %191 = vector.broadcast %190 : vector<1x4xf32> to vector<8x4xf32>
    %192 = arith.select %189, %191, %187 : vector<8x4xi1>, vector<8x4xf32>
    %c3_i32 = arith.constant 3 : i32
    %193 = vector.broadcast %c3_i32 : i32 to vector<8x8xi32>
    %194 = arith.cmpi eq, %8, %193 : vector<8x8xi32>
    %cst_54 = arith.constant 0.000000e+00 : f32
    %195 = vector.broadcast %cst_54 : f32 to vector<8x8xf32>
    %196 = arith.select %194, %181, %195 : vector<8x8xi1>, vector<8x8xf32>
    %cst_55 = arith.constant dense<0.000000e+00> : vector<8xf32>
    %197 = vector.multi_reduction <add>, %196, %cst_55 [0] : vector<8x8xf32> to vector<8xf32>
    %198 = vector.shape_cast %197 : vector<8xf32> to vector<1x8xf32>
    %c3_i32_56 = arith.constant 3 : i32
    %199 = vector.broadcast %c3_i32_56 : i32 to vector<8x4xi32>
    %200 = arith.cmpi eq, %22, %199 : vector<8x4xi32>
    %cst_57 = arith.constant 0.000000e+00 : f32
    %201 = vector.broadcast %cst_57 : f32 to vector<8x4xf32>
    %202 = arith.select %200, %192, %201 : vector<8x4xi1>, vector<8x4xf32>
    %cst_58 = arith.constant dense<0.000000e+00> : vector<4xf32>
    %203 = vector.multi_reduction <add>, %202, %cst_58 [0] : vector<8x4xf32> to vector<4xf32>
    %204 = vector.shape_cast %203 : vector<4xf32> to vector<1x4xf32>
    %c3_i32_59 = arith.constant 3 : i32
    %205 = vector.broadcast %c3_i32_59 : i32 to vector<1x8xi32>
    %206 = arith.cmpi eq, %24, %205 : vector<1x8xi32>
    %cst_60 = arith.constant 0.000000e+00 : f32
    %207 = vector.broadcast %cst_60 : f32 to vector<1x8xf32>
    %208 = arith.select %206, %198, %207 : vector<1x8xi1>, vector<1x8xf32>
    %cst_61 = arith.constant dense<0.000000e+00> : vector<1xf32>
    %209 = vector.multi_reduction <add>, %208, %cst_61 [1] : vector<1x8xf32> to vector<1xf32>
    %210 = vector.shape_cast %209 : vector<1xf32> to vector<1x1xf32>
    %cst_62 = arith.constant 1.000000e+00 : f32
    %211 = vector.broadcast %cst_62 : f32 to vector<1x1xf32>
    %212 = arith.divf %211, %210 : vector<1x1xf32>
    %213 = vector.broadcast %212 : vector<1x1xf32> to vector<1x8xf32>
    %214 = arith.mulf %198, %213 : vector<1x8xf32>
    %215 = vector.broadcast %212 : vector<1x1xf32> to vector<1x4xf32>
    %216 = arith.mulf %204, %215 : vector<1x4xf32>
    %c3_i32_63 = arith.constant 3 : i32
    %217 = vector.broadcast %c3_i32_63 : i32 to vector<8x8xi32>
    %218 = arith.cmpi eq, %9, %217 : vector<8x8xi32>
    %cst_64 = arith.constant 0.000000e+00 : f32
    %219 = vector.broadcast %cst_64 : f32 to vector<8x8xf32>
    %220 = arith.select %218, %181, %219 : vector<8x8xi1>, vector<8x8xf32>
    %cst_65 = arith.constant dense<0.000000e+00> : vector<8xf32>
    %221 = vector.multi_reduction <add>, %220, %cst_65 [1] : vector<8x8xf32> to vector<8xf32>
    %222 = vector.shape_cast %221 : vector<8xf32> to vector<8x1xf32>
    %c3_i32_66 = arith.constant 3 : i32
    %223 = vector.broadcast %c3_i32_66 : i32 to vector<8x1xi32>
    %224 = arith.cmpi eq, %23, %223 : vector<8x1xi32>
    %cst_67 = arith.constant 0.000000e+00 : f32
    %225 = vector.broadcast %cst_67 : f32 to vector<8x1xf32>
    %226 = arith.select %224, %225, %222 : vector<8x1xi1>, vector<8x1xf32>
    %c3_i32_68 = arith.constant 3 : i32
    %227 = vector.broadcast %c3_i32_68 : i32 to vector<8x1xi32>
    %228 = arith.cmpi eq, %23, %227 : vector<8x1xi32>
    %229 = vector.broadcast %226 : vector<8x1xf32> to vector<8x8xf32>
    %230 = vector.broadcast %214 : vector<1x8xf32> to vector<8x8xf32>
    %231 = arith.mulf %229, %230 : vector<8x8xf32>
    %232 = arith.subf %181, %231 : vector<8x8xf32>
    %233 = vector.shape_cast %228 : vector<8x1xi1> to vector<8x1xi1>
    %234 = vector.broadcast %233 : vector<8x1xi1> to vector<8x8xi1>
    %235 = vector.shape_cast %214 : vector<1x8xf32> to vector<1x8xf32>
    %236 = vector.broadcast %235 : vector<1x8xf32> to vector<8x8xf32>
    %237 = arith.select %234, %236, %232 : vector<8x8xi1>, vector<8x8xf32>
    %c3_i32_69 = arith.constant 3 : i32
    %238 = vector.broadcast %c3_i32_69 : i32 to vector<8x1xi32>
    %239 = arith.cmpi eq, %23, %238 : vector<8x1xi32>
    %240 = vector.broadcast %226 : vector<8x1xf32> to vector<8x4xf32>
    %241 = vector.broadcast %216 : vector<1x4xf32> to vector<8x4xf32>
    %242 = arith.mulf %240, %241 : vector<8x4xf32>
    %243 = arith.subf %192, %242 : vector<8x4xf32>
    %244 = vector.shape_cast %239 : vector<8x1xi1> to vector<8x1xi1>
    %245 = vector.broadcast %244 : vector<8x1xi1> to vector<8x4xi1>
    %246 = vector.shape_cast %216 : vector<1x4xf32> to vector<1x4xf32>
    %247 = vector.broadcast %246 : vector<1x4xf32> to vector<8x4xf32>
    %248 = arith.select %245, %247, %243 : vector<8x4xi1>, vector<8x4xf32>
    %c4_i32 = arith.constant 4 : i32
    %249 = vector.broadcast %c4_i32 : i32 to vector<8x8xi32>
    %250 = arith.cmpi eq, %8, %249 : vector<8x8xi32>
    %cst_70 = arith.constant 0.000000e+00 : f32
    %251 = vector.broadcast %cst_70 : f32 to vector<8x8xf32>
    %252 = arith.select %250, %237, %251 : vector<8x8xi1>, vector<8x8xf32>
    %cst_71 = arith.constant dense<0.000000e+00> : vector<8xf32>
    %253 = vector.multi_reduction <add>, %252, %cst_71 [0] : vector<8x8xf32> to vector<8xf32>
    %254 = vector.shape_cast %253 : vector<8xf32> to vector<1x8xf32>
    %c4_i32_72 = arith.constant 4 : i32
    %255 = vector.broadcast %c4_i32_72 : i32 to vector<8x4xi32>
    %256 = arith.cmpi eq, %22, %255 : vector<8x4xi32>
    %cst_73 = arith.constant 0.000000e+00 : f32
    %257 = vector.broadcast %cst_73 : f32 to vector<8x4xf32>
    %258 = arith.select %256, %248, %257 : vector<8x4xi1>, vector<8x4xf32>
    %cst_74 = arith.constant dense<0.000000e+00> : vector<4xf32>
    %259 = vector.multi_reduction <add>, %258, %cst_74 [0] : vector<8x4xf32> to vector<4xf32>
    %260 = vector.shape_cast %259 : vector<4xf32> to vector<1x4xf32>
    %c4_i32_75 = arith.constant 4 : i32
    %261 = vector.broadcast %c4_i32_75 : i32 to vector<1x8xi32>
    %262 = arith.cmpi eq, %24, %261 : vector<1x8xi32>
    %cst_76 = arith.constant 0.000000e+00 : f32
    %263 = vector.broadcast %cst_76 : f32 to vector<1x8xf32>
    %264 = arith.select %262, %254, %263 : vector<1x8xi1>, vector<1x8xf32>
    %cst_77 = arith.constant dense<0.000000e+00> : vector<1xf32>
    %265 = vector.multi_reduction <add>, %264, %cst_77 [1] : vector<1x8xf32> to vector<1xf32>
    %266 = vector.shape_cast %265 : vector<1xf32> to vector<1x1xf32>
    %cst_78 = arith.constant 1.000000e+00 : f32
    %267 = vector.broadcast %cst_78 : f32 to vector<1x1xf32>
    %268 = arith.divf %267, %266 : vector<1x1xf32>
    %269 = vector.broadcast %268 : vector<1x1xf32> to vector<1x8xf32>
    %270 = arith.mulf %254, %269 : vector<1x8xf32>
    %271 = vector.broadcast %268 : vector<1x1xf32> to vector<1x4xf32>
    %272 = arith.mulf %260, %271 : vector<1x4xf32>
    %c4_i32_79 = arith.constant 4 : i32
    %273 = vector.broadcast %c4_i32_79 : i32 to vector<8x8xi32>
    %274 = arith.cmpi eq, %9, %273 : vector<8x8xi32>
    %cst_80 = arith.constant 0.000000e+00 : f32
    %275 = vector.broadcast %cst_80 : f32 to vector<8x8xf32>
    %276 = arith.select %274, %237, %275 : vector<8x8xi1>, vector<8x8xf32>
    %cst_81 = arith.constant dense<0.000000e+00> : vector<8xf32>
    %277 = vector.multi_reduction <add>, %276, %cst_81 [1] : vector<8x8xf32> to vector<8xf32>
    %278 = vector.shape_cast %277 : vector<8xf32> to vector<8x1xf32>
    %c4_i32_82 = arith.constant 4 : i32
    %279 = vector.broadcast %c4_i32_82 : i32 to vector<8x1xi32>
    %280 = arith.cmpi eq, %23, %279 : vector<8x1xi32>
    %cst_83 = arith.constant 0.000000e+00 : f32
    %281 = vector.broadcast %cst_83 : f32 to vector<8x1xf32>
    %282 = arith.select %280, %281, %278 : vector<8x1xi1>, vector<8x1xf32>
    %c4_i32_84 = arith.constant 4 : i32
    %283 = vector.broadcast %c4_i32_84 : i32 to vector<8x1xi32>
    %284 = arith.cmpi eq, %23, %283 : vector<8x1xi32>
    %285 = vector.broadcast %282 : vector<8x1xf32> to vector<8x8xf32>
    %286 = vector.broadcast %270 : vector<1x8xf32> to vector<8x8xf32>
    %287 = arith.mulf %285, %286 : vector<8x8xf32>
    %288 = arith.subf %237, %287 : vector<8x8xf32>
    %289 = vector.shape_cast %284 : vector<8x1xi1> to vector<8x1xi1>
    %290 = vector.broadcast %289 : vector<8x1xi1> to vector<8x8xi1>
    %291 = vector.shape_cast %270 : vector<1x8xf32> to vector<1x8xf32>
    %292 = vector.broadcast %291 : vector<1x8xf32> to vector<8x8xf32>
    %293 = arith.select %290, %292, %288 : vector<8x8xi1>, vector<8x8xf32>
    %c4_i32_85 = arith.constant 4 : i32
    %294 = vector.broadcast %c4_i32_85 : i32 to vector<8x1xi32>
    %295 = arith.cmpi eq, %23, %294 : vector<8x1xi32>
    %296 = vector.broadcast %282 : vector<8x1xf32> to vector<8x4xf32>
    %297 = vector.broadcast %272 : vector<1x4xf32> to vector<8x4xf32>
    %298 = arith.mulf %296, %297 : vector<8x4xf32>
    %299 = arith.subf %248, %298 : vector<8x4xf32>
    %300 = vector.shape_cast %295 : vector<8x1xi1> to vector<8x1xi1>
    %301 = vector.broadcast %300 : vector<8x1xi1> to vector<8x4xi1>
    %302 = vector.shape_cast %272 : vector<1x4xf32> to vector<1x4xf32>
    %303 = vector.broadcast %302 : vector<1x4xf32> to vector<8x4xf32>
    %304 = arith.select %301, %303, %299 : vector<8x4xi1>, vector<8x4xf32>
    %c5_i32 = arith.constant 5 : i32
    %305 = vector.broadcast %c5_i32 : i32 to vector<8x8xi32>
    %306 = arith.cmpi eq, %8, %305 : vector<8x8xi32>
    %cst_86 = arith.constant 0.000000e+00 : f32
    %307 = vector.broadcast %cst_86 : f32 to vector<8x8xf32>
    %308 = arith.select %306, %293, %307 : vector<8x8xi1>, vector<8x8xf32>
    %cst_87 = arith.constant dense<0.000000e+00> : vector<8xf32>
    %309 = vector.multi_reduction <add>, %308, %cst_87 [0] : vector<8x8xf32> to vector<8xf32>
    %310 = vector.shape_cast %309 : vector<8xf32> to vector<1x8xf32>
    %c5_i32_88 = arith.constant 5 : i32
    %311 = vector.broadcast %c5_i32_88 : i32 to vector<8x4xi32>
    %312 = arith.cmpi eq, %22, %311 : vector<8x4xi32>
    %cst_89 = arith.constant 0.000000e+00 : f32
    %313 = vector.broadcast %cst_89 : f32 to vector<8x4xf32>
    %314 = arith.select %312, %304, %313 : vector<8x4xi1>, vector<8x4xf32>
    %cst_90 = arith.constant dense<0.000000e+00> : vector<4xf32>
    %315 = vector.multi_reduction <add>, %314, %cst_90 [0] : vector<8x4xf32> to vector<4xf32>
    %316 = vector.shape_cast %315 : vector<4xf32> to vector<1x4xf32>
    %c5_i32_91 = arith.constant 5 : i32
    %317 = vector.broadcast %c5_i32_91 : i32 to vector<1x8xi32>
    %318 = arith.cmpi eq, %24, %317 : vector<1x8xi32>
    %cst_92 = arith.constant 0.000000e+00 : f32
    %319 = vector.broadcast %cst_92 : f32 to vector<1x8xf32>
    %320 = arith.select %318, %310, %319 : vector<1x8xi1>, vector<1x8xf32>
    %cst_93 = arith.constant dense<0.000000e+00> : vector<1xf32>
    %321 = vector.multi_reduction <add>, %320, %cst_93 [1] : vector<1x8xf32> to vector<1xf32>
    %322 = vector.shape_cast %321 : vector<1xf32> to vector<1x1xf32>
    %cst_94 = arith.constant 1.000000e+00 : f32
    %323 = vector.broadcast %cst_94 : f32 to vector<1x1xf32>
    %324 = arith.divf %323, %322 : vector<1x1xf32>
    %325 = vector.broadcast %324 : vector<1x1xf32> to vector<1x8xf32>
    %326 = arith.mulf %310, %325 : vector<1x8xf32>
    %327 = vector.broadcast %324 : vector<1x1xf32> to vector<1x4xf32>
    %328 = arith.mulf %316, %327 : vector<1x4xf32>
    %c5_i32_95 = arith.constant 5 : i32
    %329 = vector.broadcast %c5_i32_95 : i32 to vector<8x8xi32>
    %330 = arith.cmpi eq, %9, %329 : vector<8x8xi32>
    %cst_96 = arith.constant 0.000000e+00 : f32
    %331 = vector.broadcast %cst_96 : f32 to vector<8x8xf32>
    %332 = arith.select %330, %293, %331 : vector<8x8xi1>, vector<8x8xf32>
    %cst_97 = arith.constant dense<0.000000e+00> : vector<8xf32>
    %333 = vector.multi_reduction <add>, %332, %cst_97 [1] : vector<8x8xf32> to vector<8xf32>
    %334 = vector.shape_cast %333 : vector<8xf32> to vector<8x1xf32>
    %c5_i32_98 = arith.constant 5 : i32
    %335 = vector.broadcast %c5_i32_98 : i32 to vector<8x1xi32>
    %336 = arith.cmpi eq, %23, %335 : vector<8x1xi32>
    %cst_99 = arith.constant 0.000000e+00 : f32
    %337 = vector.broadcast %cst_99 : f32 to vector<8x1xf32>
    %338 = arith.select %336, %337, %334 : vector<8x1xi1>, vector<8x1xf32>
    %c5_i32_100 = arith.constant 5 : i32
    %339 = vector.broadcast %c5_i32_100 : i32 to vector<8x1xi32>
    %340 = arith.cmpi eq, %23, %339 : vector<8x1xi32>
    %341 = vector.broadcast %338 : vector<8x1xf32> to vector<8x8xf32>
    %342 = vector.broadcast %326 : vector<1x8xf32> to vector<8x8xf32>
    %343 = arith.mulf %341, %342 : vector<8x8xf32>
    %344 = arith.subf %293, %343 : vector<8x8xf32>
    %345 = vector.shape_cast %340 : vector<8x1xi1> to vector<8x1xi1>
    %346 = vector.broadcast %345 : vector<8x1xi1> to vector<8x8xi1>
    %347 = vector.shape_cast %326 : vector<1x8xf32> to vector<1x8xf32>
    %348 = vector.broadcast %347 : vector<1x8xf32> to vector<8x8xf32>
    %349 = arith.select %346, %348, %344 : vector<8x8xi1>, vector<8x8xf32>
    %c5_i32_101 = arith.constant 5 : i32
    %350 = vector.broadcast %c5_i32_101 : i32 to vector<8x1xi32>
    %351 = arith.cmpi eq, %23, %350 : vector<8x1xi32>
    %352 = vector.broadcast %338 : vector<8x1xf32> to vector<8x4xf32>
    %353 = vector.broadcast %328 : vector<1x4xf32> to vector<8x4xf32>
    %354 = arith.mulf %352, %353 : vector<8x4xf32>
    %355 = arith.subf %304, %354 : vector<8x4xf32>
    %356 = vector.shape_cast %351 : vector<8x1xi1> to vector<8x1xi1>
    %357 = vector.broadcast %356 : vector<8x1xi1> to vector<8x4xi1>
    %358 = vector.shape_cast %328 : vector<1x4xf32> to vector<1x4xf32>
    %359 = vector.broadcast %358 : vector<1x4xf32> to vector<8x4xf32>
    %360 = arith.select %357, %359, %355 : vector<8x4xi1>, vector<8x4xf32>
    %c6_i32 = arith.constant 6 : i32
    %361 = vector.broadcast %c6_i32 : i32 to vector<8x8xi32>
    %362 = arith.cmpi eq, %8, %361 : vector<8x8xi32>
    %cst_102 = arith.constant 0.000000e+00 : f32
    %363 = vector.broadcast %cst_102 : f32 to vector<8x8xf32>
    %364 = arith.select %362, %349, %363 : vector<8x8xi1>, vector<8x8xf32>
    %cst_103 = arith.constant dense<0.000000e+00> : vector<8xf32>
    %365 = vector.multi_reduction <add>, %364, %cst_103 [0] : vector<8x8xf32> to vector<8xf32>
    %366 = vector.shape_cast %365 : vector<8xf32> to vector<1x8xf32>
    %c6_i32_104 = arith.constant 6 : i32
    %367 = vector.broadcast %c6_i32_104 : i32 to vector<8x4xi32>
    %368 = arith.cmpi eq, %22, %367 : vector<8x4xi32>
    %cst_105 = arith.constant 0.000000e+00 : f32
    %369 = vector.broadcast %cst_105 : f32 to vector<8x4xf32>
    %370 = arith.select %368, %360, %369 : vector<8x4xi1>, vector<8x4xf32>
    %cst_106 = arith.constant dense<0.000000e+00> : vector<4xf32>
    %371 = vector.multi_reduction <add>, %370, %cst_106 [0] : vector<8x4xf32> to vector<4xf32>
    %372 = vector.shape_cast %371 : vector<4xf32> to vector<1x4xf32>
    %c6_i32_107 = arith.constant 6 : i32
    %373 = vector.broadcast %c6_i32_107 : i32 to vector<1x8xi32>
    %374 = arith.cmpi eq, %24, %373 : vector<1x8xi32>
    %cst_108 = arith.constant 0.000000e+00 : f32
    %375 = vector.broadcast %cst_108 : f32 to vector<1x8xf32>
    %376 = arith.select %374, %366, %375 : vector<1x8xi1>, vector<1x8xf32>
    %cst_109 = arith.constant dense<0.000000e+00> : vector<1xf32>
    %377 = vector.multi_reduction <add>, %376, %cst_109 [1] : vector<1x8xf32> to vector<1xf32>
    %378 = vector.shape_cast %377 : vector<1xf32> to vector<1x1xf32>
    %cst_110 = arith.constant 1.000000e+00 : f32
    %379 = vector.broadcast %cst_110 : f32 to vector<1x1xf32>
    %380 = arith.divf %379, %378 : vector<1x1xf32>
    %381 = vector.broadcast %380 : vector<1x1xf32> to vector<1x8xf32>
    %382 = arith.mulf %366, %381 : vector<1x8xf32>
    %383 = vector.broadcast %380 : vector<1x1xf32> to vector<1x4xf32>
    %384 = arith.mulf %372, %383 : vector<1x4xf32>
    %c6_i32_111 = arith.constant 6 : i32
    %385 = vector.broadcast %c6_i32_111 : i32 to vector<8x8xi32>
    %386 = arith.cmpi eq, %9, %385 : vector<8x8xi32>
    %cst_112 = arith.constant 0.000000e+00 : f32
    %387 = vector.broadcast %cst_112 : f32 to vector<8x8xf32>
    %388 = arith.select %386, %349, %387 : vector<8x8xi1>, vector<8x8xf32>
    %cst_113 = arith.constant dense<0.000000e+00> : vector<8xf32>
    %389 = vector.multi_reduction <add>, %388, %cst_113 [1] : vector<8x8xf32> to vector<8xf32>
    %390 = vector.shape_cast %389 : vector<8xf32> to vector<8x1xf32>
    %c6_i32_114 = arith.constant 6 : i32
    %391 = vector.broadcast %c6_i32_114 : i32 to vector<8x1xi32>
    %392 = arith.cmpi eq, %23, %391 : vector<8x1xi32>
    %cst_115 = arith.constant 0.000000e+00 : f32
    %393 = vector.broadcast %cst_115 : f32 to vector<8x1xf32>
    %394 = arith.select %392, %393, %390 : vector<8x1xi1>, vector<8x1xf32>
    %c6_i32_116 = arith.constant 6 : i32
    %395 = vector.broadcast %c6_i32_116 : i32 to vector<8x1xi32>
    %396 = arith.cmpi eq, %23, %395 : vector<8x1xi32>
    %397 = vector.broadcast %394 : vector<8x1xf32> to vector<8x8xf32>
    %398 = vector.broadcast %382 : vector<1x8xf32> to vector<8x8xf32>
    %399 = arith.mulf %397, %398 : vector<8x8xf32>
    %400 = arith.subf %349, %399 : vector<8x8xf32>
    %401 = vector.shape_cast %396 : vector<8x1xi1> to vector<8x1xi1>
    %402 = vector.broadcast %401 : vector<8x1xi1> to vector<8x8xi1>
    %403 = vector.shape_cast %382 : vector<1x8xf32> to vector<1x8xf32>
    %404 = vector.broadcast %403 : vector<1x8xf32> to vector<8x8xf32>
    %405 = arith.select %402, %404, %400 : vector<8x8xi1>, vector<8x8xf32>
    %c6_i32_117 = arith.constant 6 : i32
    %406 = vector.broadcast %c6_i32_117 : i32 to vector<8x1xi32>
    %407 = arith.cmpi eq, %23, %406 : vector<8x1xi32>
    %408 = vector.broadcast %394 : vector<8x1xf32> to vector<8x4xf32>
    %409 = vector.broadcast %384 : vector<1x4xf32> to vector<8x4xf32>
    %410 = arith.mulf %408, %409 : vector<8x4xf32>
    %411 = arith.subf %360, %410 : vector<8x4xf32>
    %412 = vector.shape_cast %407 : vector<8x1xi1> to vector<8x1xi1>
    %413 = vector.broadcast %412 : vector<8x1xi1> to vector<8x4xi1>
    %414 = vector.shape_cast %384 : vector<1x4xf32> to vector<1x4xf32>
    %415 = vector.broadcast %414 : vector<1x4xf32> to vector<8x4xf32>
    %416 = arith.select %413, %415, %411 : vector<8x4xi1>, vector<8x4xf32>
    %c7_i32 = arith.constant 7 : i32
    %417 = vector.broadcast %c7_i32 : i32 to vector<8x8xi32>
    %418 = arith.cmpi eq, %8, %417 : vector<8x8xi32>
    %cst_118 = arith.constant 0.000000e+00 : f32
    %419 = vector.broadcast %cst_118 : f32 to vector<8x8xf32>
    %420 = arith.select %418, %405, %419 : vector<8x8xi1>, vector<8x8xf32>
    %cst_119 = arith.constant dense<0.000000e+00> : vector<8xf32>
    %421 = vector.multi_reduction <add>, %420, %cst_119 [0] : vector<8x8xf32> to vector<8xf32>
    %422 = vector.shape_cast %421 : vector<8xf32> to vector<1x8xf32>
    %c7_i32_120 = arith.constant 7 : i32
    %423 = vector.broadcast %c7_i32_120 : i32 to vector<8x4xi32>
    %424 = arith.cmpi eq, %22, %423 : vector<8x4xi32>
    %cst_121 = arith.constant 0.000000e+00 : f32
    %425 = vector.broadcast %cst_121 : f32 to vector<8x4xf32>
    %426 = arith.select %424, %416, %425 : vector<8x4xi1>, vector<8x4xf32>
    %cst_122 = arith.constant dense<0.000000e+00> : vector<4xf32>
    %427 = vector.multi_reduction <add>, %426, %cst_122 [0] : vector<8x4xf32> to vector<4xf32>
    %428 = vector.shape_cast %427 : vector<4xf32> to vector<1x4xf32>
    %c7_i32_123 = arith.constant 7 : i32
    %429 = vector.broadcast %c7_i32_123 : i32 to vector<1x8xi32>
    %430 = arith.cmpi eq, %24, %429 : vector<1x8xi32>
    %cst_124 = arith.constant 0.000000e+00 : f32
    %431 = vector.broadcast %cst_124 : f32 to vector<1x8xf32>
    %432 = arith.select %430, %422, %431 : vector<1x8xi1>, vector<1x8xf32>
    %cst_125 = arith.constant dense<0.000000e+00> : vector<1xf32>
    %433 = vector.multi_reduction <add>, %432, %cst_125 [1] : vector<1x8xf32> to vector<1xf32>
    %434 = vector.shape_cast %433 : vector<1xf32> to vector<1x1xf32>
    %cst_126 = arith.constant 1.000000e+00 : f32
    %435 = vector.broadcast %cst_126 : f32 to vector<1x1xf32>
    %436 = arith.divf %435, %434 : vector<1x1xf32>
    %437 = vector.broadcast %436 : vector<1x1xf32> to vector<1x4xf32>
    %438 = arith.mulf %428, %437 : vector<1x4xf32>
    %c7_i32_127 = arith.constant 7 : i32
    %439 = vector.broadcast %c7_i32_127 : i32 to vector<8x8xi32>
    %440 = arith.cmpi eq, %9, %439 : vector<8x8xi32>
    %cst_128 = arith.constant 0.000000e+00 : f32
    %441 = vector.broadcast %cst_128 : f32 to vector<8x8xf32>
    %442 = arith.select %440, %405, %441 : vector<8x8xi1>, vector<8x8xf32>
    %cst_129 = arith.constant dense<0.000000e+00> : vector<8xf32>
    %443 = vector.multi_reduction <add>, %442, %cst_129 [1] : vector<8x8xf32> to vector<8xf32>
    %444 = vector.shape_cast %443 : vector<8xf32> to vector<8x1xf32>
    %c7_i32_130 = arith.constant 7 : i32
    %445 = vector.broadcast %c7_i32_130 : i32 to vector<8x1xi32>
    %446 = arith.cmpi eq, %23, %445 : vector<8x1xi32>
    %cst_131 = arith.constant 0.000000e+00 : f32
    %447 = vector.broadcast %cst_131 : f32 to vector<8x1xf32>
    %448 = arith.select %446, %447, %444 : vector<8x1xi1>, vector<8x1xf32>
    %c7_i32_132 = arith.constant 7 : i32
    %449 = vector.broadcast %c7_i32_132 : i32 to vector<8x1xi32>
    %450 = arith.cmpi eq, %23, %449 : vector<8x1xi32>
    %451 = vector.broadcast %448 : vector<8x1xf32> to vector<8x4xf32>
    %452 = vector.broadcast %438 : vector<1x4xf32> to vector<8x4xf32>
    %453 = arith.mulf %451, %452 : vector<8x4xf32>
    %454 = arith.subf %416, %453 : vector<8x4xf32>
    %455 = vector.shape_cast %450 : vector<8x1xi1> to vector<8x1xi1>
    %456 = vector.broadcast %455 : vector<8x1xi1> to vector<8x4xi1>
    %457 = vector.shape_cast %438 : vector<1x4xf32> to vector<1x4xf32>
    %458 = vector.broadcast %457 : vector<1x4xf32> to vector<8x4xf32>
    %459 = arith.select %456, %458, %454 : vector<8x4xi1>, vector<8x4xf32>
    %cst_133 = arith.constant dense<0.000000e+00> : vector<16x4xf32>
    %460 = tpu.matmul %7, %459, %cst_133 {dimension_numbers = #tpu.dot_dimension_numbers<[1], [0], [0], [1], [0, 0, 1, 1], [], []>} : vector<16x8xf32>, vector<8x4xf32>, vector<16x4xf32> -> vector<16x4xf32>
    %461 = vector.broadcast %1 : f32 to vector<16x4xf32>
    %462 = arith.mulf %461, %460 : vector<16x4xf32>
    %463 = vector.broadcast %2 : f32 to vector<16x4xf32>
    %464 = arith.addf %462, %463 : vector<16x4xf32>
    %cst_134 = arith.constant dense<0xFF800000> : vector<16xf32>
    %465 = vector.multi_reduction <maximumf>, %464, %cst_134 [1] : vector<16x4xf32> to vector<16xf32>
    %466 = vector.shape_cast %465 : vector<16xf32> to vector<16x1xf32>
    %467 = vector.broadcast %466 : vector<16x1xf32> to vector<16x4xf32>
    %468 = arith.subf %464, %467 : vector<16x4xf32>
    %469 = math.exp %468 : vector<16x4xf32>
    %cst_135 = arith.constant dense<0.000000e+00> : vector<16xf32>
    %470 = vector.multi_reduction <add>, %469, %cst_135 [1] : vector<16x4xf32> to vector<16xf32>
    %471 = vector.shape_cast %470 : vector<16xf32> to vector<16x1xf32>
    %472 = math.log %471 : vector<16x1xf32>
    %473 = arith.addf %466, %472 : vector<16x1xf32>
    %474 = vector.broadcast %473 : vector<16x1xf32> to vector<16x4xf32>
    %475 = arith.subf %464, %474 : vector<16x4xf32>
    %c0_136 = arith.constant 0 : index
    %c0_137 = arith.constant 0 : index
    %476 = vector.load %arg5[%c0_136, %c0_137] : memref<16x4xf32, #tpu.memory_space<vmem>>, vector<16x4xf32>
    tpu.vector_store %arg5[%c0_136, %c0_137], %475 {strides = array<i32>} : memref<16x4xf32, #tpu.memory_space<vmem>>, vector<16x4xf32>,
    %c0_138 = arith.constant 0 : index
    %c0_139 = arith.constant 0 : index
    %477 = vector.load %arg2[%c0_138, %c0_139] : memref<16x1xi32, #tpu.memory_space<vmem>>, vector<16x1xi32>
    %478 = tpu.iota {dimensions = array<i32: 1>} : vector<16x4xi32>
    %479 = vector.broadcast %477 : vector<16x1xi32> to vector<16x4xi32>
    %480 = arith.cmpi eq, %478, %479 : vector<16x4xi32>
    %481 = arith.extui %480 : vector<16x4xi1> to vector<16x4xi32>
    %482 = arith.sitofp %481 : vector<16x4xi32> to vector<16x4xf32>
    %483 = arith.mulf %482, %475 : vector<16x4xf32>
    %cst_140 = arith.constant dense<0.000000e+00> : vector<16xf32>
    %484 = vector.multi_reduction <add>, %483, %cst_140 [1] : vector<16x4xf32> to vector<16xf32>
    %485 = vector.shape_cast %484 : vector<16xf32> to vector<16x1xf32>
    %cst_141 = arith.constant 0.000000e+00 : f32
    %486 = vector.broadcast %cst_141 : f32 to vector<16x1xf32>
    %487 = arith.subf %486, %485 : vector<16x1xf32>
    %cst_142 = arith.constant dense<0.000000e+00> : vector<1xf32>
    %488 = vector.multi_reduction <add>, %487, %cst_142 [0] : vector<16x1xf32> to vector<1xf32>
    %489 = vector.shape_cast %488 : vector<1xf32> to vector<1x1xf32>
    %cst_143 = arith.constant 6.250000e-02 : f32
    %490 = vector.broadcast %cst_143 : f32 to vector<1x1xf32>
    %491 = arith.mulf %489, %490 : vector<1x1xf32>
    %c0_144 = arith.constant 0 : index
    %c0_145 = arith.constant 0 : index
    %492 = vector.load %arg6[%c0_144, %c0_145] : memref<1x1xf32, #tpu.memory_space<vmem>>, vector<1x1xf32>
    tpu.vector_store %arg6[%c0_144, %c0_145], %491 {strides = array<i32>} : memref<1x1xf32, #tpu.memory_space<vmem>>, vector<1x1xf32>,
    %493 = arith.sitofp %478 : vector<16x4xi32> to vector<16x4xf32>
    %494 = vector.broadcast %466 : vector<16x1xf32> to vector<16x4xf32>
    %495 = arith.cmpf oge, %464, %494 : vector<16x4xf32>
    %cst_146 = arith.constant 4.000000e+00 : f32
    %496 = vector.broadcast %cst_146 : f32 to vector<16x4xf32>
    %497 = arith.select %495, %493, %496 : vector<16x4xi1>, vector<16x4xf32>
    %cst_147 = arith.constant dense<0x7F800000> : vector<16xf32>
    %498 = vector.multi_reduction <minimumf>, %497, %cst_147 [1] : vector<16x4xf32> to vector<16xf32>
    %499 = vector.shape_cast %498 : vector<16xf32> to vector<16x1xf32>
    %500 = arith.sitofp %477 : vector<16x1xi32> to vector<16x1xf32>
    %501 = arith.cmpf oeq, %499, %500 : vector<16x1xf32>
    %502 = arith.extui %501 : vector<16x1xi1> to vector<16x1xi32>
    %503 = arith.sitofp %502 : vector<16x1xi32> to vector<16x1xf32>
    %cst_148 = arith.constant dense<0.000000e+00> : vector<1xf32>
    %504 = vector.multi_reduction <add>, %503, %cst_148 [0] : vector<16x1xf32> to vector<1xf32>
    %505 = vector.shape_cast %504 : vector<1xf32> to vector<1x1xf32>
    %cst_149 = arith.constant 6.250000e-02 : f32
    %506 = vector.broadcast %cst_149 : f32 to vector<1x1xf32>
    %507 = arith.mulf %505, %506 : vector<1x1xf32>
    %c0_150 = arith.constant 0 : index
    %c0_151 = arith.constant 0 : index
    %508 = vector.load %arg7[%c0_150, %c0_151] : memref<1x1xf32, #tpu.memory_space<vmem>>, vector<1x1xf32>
    tpu.vector_store %arg7[%c0_150, %c0_151], %507 {strides = array<i32>} : memref<1x1xf32, #tpu.memory_space<vmem>>, vector<1x1xf32>,
    return
  }
}

</mosaic_0001>

<llo_original>
// kernel: _forward_jit.1
$region0: #{_forward_jit.1}
  #allocation0 [shape = 'u32[]', space=smem, size = 0x4, offset = 0x4, fixed_abs, tag = 'smem constant byte address 0x4 - core index']
  #allocation1 [shape = 'u32[144,128]{1,0:T(1,128)}', space=vmem, size = 0x12000, scoped, tag = 'internal scratch']
  %s0 = inlined_call_operand.vmem [shape: f32[3], index: 0, kind: input, shape index: {}]
  %s1 = inlined_call_operand.vmem [shape: s32[8,1], index: 1, kind: input, shape index: {}]
  %s2 = inlined_call_operand.vmem [shape: s32[16,1], index: 2, kind: input, shape index: {}]
  %s3 = inlined_call_operand.vmem [shape: bf16[24,768], index: 3, kind: input, shape index: {}]
  %s4 = inlined_call_operand.vmem [shape: bf16[768,8], index: 4, kind: input, shape index: {}]
  %s5 = inlined_call_operand.vmem [shape: f32[16,4], index: 5, kind: output, shape index: {0}]
  %s6 = inlined_call_operand.hbm [shape: f32[1,1], index: 6, kind: output, shape index: {1}]
  %s7 = inlined_call_operand.hbm [shape: f32[1,1], index: 7, kind: output, shape index: {2}]
  %8 = xla_tuple %s5, %s6, %s7
  %s9 = sld [smem:[#allocation0]]
  $region50: #{_forward_jit.1} parent=0
    _
  %s11 = ssub.s32 1, %s9
  %s12 = scalar_select 0, %s11, %s9
  $region1: #{_forward_jit.1} parent=0
    #allocation2 [shape = 'u8[512]{0}', space=smem, size = 0x200, scoped, tag = 'input window, operand 0, single buffered']
    #allocation3 [shape = 's32[1]{0}', space=sflag, size = 0x4, scoped, tag = 'scoped memory for _forward_jit.1']
    #allocation4 [shape = 's32[1]{0}', space=sflag, size = 0x4, scoped, tag = 'scoped memory for _forward_jit.1']
    #allocation5 [shape = 'u8[512]{0}', space=vmem, size = 0x400, scoped, tag = 'output window, operand 1, single buffered']
    #allocation6 [shape = 'u8[512]{0}', space=vmem, size = 0x400, scoped, tag = 'output window, operand 2, single buffered']
    #allocation7 [shape = 's32[1]{0}', space=sflag, size = 0x4, scoped, tag = 'scoped memory for _forward_jit.1']
    %13 = vsyncpa [#allocation4], 0
    %14 = vsyncpa [#allocation3], 0
    %15 = vsyncpa [#allocation7], 0
    // Predicated region
    $region2: #{_forward_jit.1} parent=1 // pred_check
      _
    $region3: #{_forward_jit.1} parent=1 // pred_check_branch
      %17 = sbr.rel (0) target = $region5
    $region4: #{_forward_jit.1} parent=1 // pred_region
      %s19 = ssub.s32 16, 16
      %20 = vsyncadd [#allocation4], %s19
      %s22 = sshll.u32 %s0, 4
      %s23 = int_to_ptr.vmem [resolvable:$true] %s22
      %25 = dma.vmem_to_smem %s23, 16, [#allocation2], [#allocation4]
    $region5: #{_forward_jit.1} parent=1 // pred_fallthru
      _
    // Predicated region
    $region6: #{_forward_jit.1} parent=1 // pred_check
      _
    $region7: #{_forward_jit.1} parent=1 // pred_check_branch
      %27 = sbr.rel (0) target = $region9
    $region8: #{_forward_jit.1} parent=1 // pred_region
      _
    $region9: #{_forward_jit.1} parent=1 // pred_fallthru
      _
    // Predicated region
    $region10: #{_forward_jit.1} parent=1 // pred_check
      _
    $region11: #{_forward_jit.1} parent=1 // pred_check_branch
      %29 = sbr.rel (0) target = $region13
    $region12: #{_forward_jit.1} parent=1 // pred_region
      _
    $region13: #{_forward_jit.1} parent=1 // pred_fallthru
      _
    // Predicated region
    $region14: #{_forward_jit.1} parent=1 // pred_check
      _
    $region15: #{_forward_jit.1} parent=1 // pred_check_branch
      %31 = sbr.rel (0) target = $region17
    $region16: #{_forward_jit.1} parent=1 // pred_region
      _
    $region17: #{_forward_jit.1} parent=1 // pred_fallthru
      _
    // Predicated region
    $region18: #{_forward_jit.1} parent=1 // pred_check
      _
    $region19: #{_forward_jit.1} parent=1 // pred_check_branch
      %33 = sbr.rel (0) target = $region21
    $region20: #{_forward_jit.1} parent=1 // pred_region
      _
    $region21: #{_forward_jit.1} parent=1 // pred_fallthru
      _
    // Predicated region
    $region22: #{_forward_jit.1} parent=1 // pred_check
      _
    $region23: #{_forward_jit.1} parent=1 // pred_check_branch
      %35 = sbr.rel (0) target = $region25
    $region24: #{_forward_jit.1} parent=1 // pred_region
      %36 = dma.done [#allocation4], 16
    $region25: #{_forward_jit.1} parent=1 // pred_fallthru
      _
    %37 = sfence
    %s39 = sld [smem:[#allocation2]]
    %s40 = sld [smem:[#allocation2 + $0x1]]
    %s41 = sld [smem:[#allocation2 + $0x2]]
    %v42 = vld [vmem:[%s3] sm:$0xff]
    %v43 = vld [vmem:[%s3 + $0x8] sm:$0xff]
    %v44 = vld [vmem:[%s3 + $0x10] sm:$0xff]
    %v45 = vld [vmem:[%s3 + $0x18] sm:$0xff]
    %v46 = vld [vmem:[%s3 + $0x20] sm:$0xff]
    %v47 = vld [vmem:[%s3 + $0x28] sm:$0xff]
    %v48 = vld [vmem:[%s3 + $0x30] sm:$0xff]
    %v49 = vld [vmem:[%s3 + $0x38] sm:$0xff]
    %v50 = vld [vmem:[%s3 + $0x40] sm:$0xff]
    %v51 = vld [vmem:[%s4] sm:$0xf]
    %v52 = vld [vmem:[%s4 + $0x4] sm:$0xf]
    %v53 = vld [vmem:[%s4 + $0x8] sm:$0xf]
    %v54 = vld [vmem:[%s4 + $0xc] sm:$0xf]
    %v55 = vld [vmem:[%s4 + $0x10] sm:$0xf]
    %v56 = vld [vmem:[%s4 + $0x14] sm:$0xf]
    %v57 = vld [vmem:[%s4 + $0x18] sm:$0xf]
    %v58 = vld [vmem:[%s4 + $0x1c] sm:$0xf]
    %v59 = vld [vmem:[%s4 + $0x20] sm:$0xf]
    %v60 = vld [vmem:[%s4 + $0x24] sm:$0xf]
    %v61 = vld [vmem:[%s4 + $0x28] sm:$0xf]
    %v62 = vld [vmem:[%s4 + $0x2c] sm:$0xf]
    %v63 = vld [vmem:[%s4 + $0x30] sm:$0xf]
    %v64 = vld [vmem:[%s4 + $0x34] sm:$0xf]
    %v65 = vld [vmem:[%s4 + $0x38] sm:$0xf]
    %v66 = vld [vmem:[%s4 + $0x3c] sm:$0xf]
    %v67 = vld [vmem:[%s4 + $0x40] sm:$0xf]
    %v68 = vld [vmem:[%s4 + $0x44] sm:$0xf]
    %v69 = vld [vmem:[%s4 + $0x48] sm:$0xf]
    %v70 = vld [vmem:[%s4 + $0x4c] sm:$0xf]
    %v71 = vld [vmem:[%s4 + $0x50] sm:$0xf]
    %v72 = vld [vmem:[%s4 + $0x54] sm:$0xf]
    %v73 = vld [vmem:[%s4 + $0x58] sm:$0xf]
    %v74 = vld [vmem:[%s4 + $0x5c] sm:$0xf]
    %v75 = vld [vmem:[%s4 + $0x60] sm:$0xf]
    %v76 = vld [vmem:[%s4 + $0x64] sm:$0xf]
    %v77 = vld [vmem:[%s4 + $0x68] sm:$0xf]
    %v78 = vld [vmem:[%s4 + $0x6c] sm:$0xf]
    %v79 = vld [vmem:[%s4 + $0x70] sm:$0xf]
    %v80 = vld [vmem:[%s4 + $0x74] sm:$0xf]
    %v81 = vld [vmem:[%s4 + $0x78] sm:$0xf]
    %v82 = vld [vmem:[%s4 + $0x7c] sm:$0xf]
    %v83 = vld [vmem:[%s4 + $0x80] sm:$0xf]
    %v84 = vld [vmem:[%s4 + $0x84] sm:$0xf]
    %v85 = vld [vmem:[%s4 + $0x88] sm:$0xf]
    %v86 = vld [vmem:[%s4 + $0x8c] sm:$0xf]
    %v87 = vld [vmem:[%s4 + $0x90] sm:$0xf]
    %v88 = vld [vmem:[%s4 + $0x94] sm:$0xf]
    %v89 = vld [vmem:[%s4 + $0x98] sm:$0xf]
    %v90 = vld [vmem:[%s4 + $0x9c] sm:$0xf]
    %v91 = vld [vmem:[%s4 + $0xa0] sm:$0xf]
    %v92 = vld [vmem:[%s4 + $0xa4] sm:$0xf]
    %v93 = vld [vmem:[%s4 + $0xa8] sm:$0xf]
    %v94 = vld [vmem:[%s4 + $0xac] sm:$0xf]
    %v95 = vld [vmem:[%s4 + $0xb0] sm:$0xf]
    %v96 = vld [vmem:[%s4 + $0xb4] sm:$0xf]
    %v97 = vld [vmem:[%s4 + $0xb8] sm:$0xf]
    %v98 = vld [vmem:[%s4 + $0xbc] sm:$0xf]
    %v99 = vld [vmem:[%s4 + $0xc0] sm:$0xf]
    %v100 = vld [vmem:[%s4 + $0xc4] sm:$0xf]
    %v101 = vld [vmem:[%s4 + $0xc8] sm:$0xf]
    %v102 = vld [vmem:[%s4 + $0xcc] sm:$0xf]
    %v103 = vld [vmem:[%s4 + $0xd0] sm:$0xf]
    %v104 = vld [vmem:[%s4 + $0xd4] sm:$0xf]
    %v105 = vld [vmem:[%s4 + $0xd8] sm:$0xf]
    %v106 = vld [vmem:[%s4 + $0xdc] sm:$0xf]
    %v107 = vld [vmem:[%s4 + $0xe0] sm:$0xf]
    %v108 = vld [vmem:[%s4 + $0xe4] sm:$0xf]
    %v109 = vld [vmem:[%s4 + $0xe8] sm:$0xf]
    %v110 = vld [vmem:[%s4 + $0xec] sm:$0xf]
    %v111 = vld [vmem:[%s4 + $0xf0] sm:$0xf]
    %v112 = vld [vmem:[%s4 + $0xf4] sm:$0xf]
    %v113 = vld [vmem:[%s4 + $0xf8] sm:$0xf]
    %v114 = vld [vmem:[%s4 + $0xfc] sm:$0xf]
    %v115 = vld [vmem:[%s4 + $0x100] sm:$0xf]
    %v116 = vld [vmem:[%s4 + $0x104] sm:$0xf]
    %v117 = vld [vmem:[%s4 + $0x108] sm:$0xf]
    %v118 = vld [vmem:[%s4 + $0x10c] sm:$0xf]
    %v119 = vld [vmem:[%s4 + $0x110] sm:$0xf]
    %v120 = vld [vmem:[%s4 + $0x114] sm:$0xf]
    %v121 = vld [vmem:[%s4 + $0x118] sm:$0xf]
    %v122 = vld [vmem:[%s4 + $0x11c] sm:$0xf]
    %v123 = vld [vmem:[%s4 + $0x120] sm:$0xf]
    %v124 = vld [vmem:[%s4 + $0x124] sm:$0xf]
    %v125 = vld [vmem:[%s4 + $0x128] sm:$0xf]
    %v126 = vld [vmem:[%s4 + $0x12c] sm:$0xf]
    %v127 = vld [vmem:[%s4 + $0x130] sm:$0xf]
    %v128 = vld [vmem:[%s4 + $0x134] sm:$0xf]
    %v129 = vld [vmem:[%s4 + $0x138] sm:$0xf]
    %v130 = vld [vmem:[%s4 + $0x13c] sm:$0xf]
    %v131 = vld [vmem:[%s4 + $0x140] sm:$0xf]
    %v132 = vld [vmem:[%s4 + $0x144] sm:$0xf]
    %v133 = vld [vmem:[%s4 + $0x148] sm:$0xf]
    %v134 = vld [vmem:[%s4 + $0x14c] sm:$0xf]
    %v135 = vld [vmem:[%s4 + $0x150] sm:$0xf]
    %v136 = vld [vmem:[%s4 + $0x154] sm:$0xf]
    %v137 = vld [vmem:[%s4 + $0x158] sm:$0xf]
    %v138 = vld [vmem:[%s4 + $0x15c] sm:$0xf]
    %v139 = vld [vmem:[%s4 + $0x160] sm:$0xf]
    %v140 = vld [vmem:[%s4 + $0x164] sm:$0xf]
    %v141 = vld [vmem:[%s4 + $0x168] sm:$0xf]
    %v142 = vld [vmem:[%s4 + $0x16c] sm:$0xf]
    %v143 = vld [vmem:[%s4 + $0x170] sm:$0xf]
    %v144 = vld [vmem:[%s4 + $0x174] sm:$0xf]
    %v145 = vld [vmem:[%s4 + $0x178] sm:$0xf]
    %v146 = vld [vmem:[%s4 + $0x17c] sm:$0xf]
    %v156 = vunpack.c.l.b16 %v42
    %v157 = vunpack.c.h.b16 %v42
    %v158 = vunpack.c.l.b16 %v43
    %v159 = vunpack.c.h.b16 %v43
    %v160 = vunpack.c.l.b16 %v44
    %v161 = vunpack.c.h.b16 %v44
    %v162 = vunpack.c.l.b16 %v45
    %v163 = vunpack.c.h.b16 %v45
    %v164 = vunpack.c.l.b16 %v46
    %v165 = vunpack.c.h.b16 %v46
    %v166 = vunpack.c.l.b16 %v47
    %v167 = vunpack.c.h.b16 %v47
    %v168 = vunpack.c.l.b16 %v48
    %v169 = vunpack.c.h.b16 %v48
    %v170 = vunpack.c.l.b16 %v49
    %v171 = vunpack.c.h.b16 %v49
    %v172 = vunpack.c.l.b16 %v50
    %v173 = vunpack.c.h.b16 %v50
    %v174 = vpack.c.b16 %v162, %v156
    %v175 = vpack.c.b16 %v163, %v157
    %v176 = vpack.c.b16 %v164, %v158
    %v177 = vpack.c.b16 %v165, %v159
    %v178 = vpack.c.b16 %v166, %v160
    %v179 = vpack.c.b16 %v167, %v161
    %v180 = vpack.c.b16 %v168, %v168
    %v181 = vpack.c.b16 %v169, %v169
    %v182 = vpack.c.b16 %v170, %v170
    %v183 = vpack.c.b16 %v171, %v171
    %v184 = vpack.c.b16 %v172, %v172
    %v185 = vpack.c.b16 %v173, %v173
    %v294 = vunpack.c.l.b16 %v51
    %v295 = vunpack.c.l.b16 %v52
    %v296 = vunpack.c.l.b16 %v53
    %v297 = vunpack.c.l.b16 %v54
    %v298 = vunpack.c.l.b16 %v55
    %v299 = vunpack.c.l.b16 %v56
    %v300 = vunpack.c.l.b16 %v57
    %v301 = vunpack.c.l.b16 %v58
    %v302 = vunpack.c.l.b16 %v59
    %v303 = vunpack.c.l.b16 %v60
    %v304 = vunpack.c.l.b16 %v61
    %v305 = vunpack.c.l.b16 %v62
    %v306 = vunpack.c.l.b16 %v63
    %v307 = vunpack.c.l.b16 %v64
    %v308 = vunpack.c.l.b16 %v65
    %v309 = vunpack.c.l.b16 %v66
    %v310 = vunpack.c.l.b16 %v67
    %v311 = vunpack.c.l.b16 %v68
    %v312 = vunpack.c.l.b16 %v69
    %v313 = vunpack.c.l.b16 %v70
    %v314 = vunpack.c.l.b16 %v71
    %v315 = vunpack.c.l.b16 %v72
    %v316 = vunpack.c.l.b16 %v73
    %v317 = vunpack.c.l.b16 %v74
    %v318 = vunpack.c.l.b16 %v75
    %v319 = vunpack.c.l.b16 %v76
    %v320 = vunpack.c.l.b16 %v77
    %v321 = vunpack.c.l.b16 %v78
    %v322 = vunpack.c.l.b16 %v79
    %v323 = vunpack.c.l.b16 %v80
    %v324 = vunpack.c.l.b16 %v81
    %v325 = vunpack.c.l.b16 %v82
    %v326 = vunpack.c.l.b16 %v83
    %v327 = vunpack.c.l.b16 %v84
    %v328 = vunpack.c.l.b16 %v85
    %v329 = vunpack.c.l.b16 %v86
    %v330 = vunpack.c.l.b16 %v87
    %v331 = vunpack.c.l.b16 %v88
    %v332 = vunpack.c.l.b16 %v89
    %v333 = vunpack.c.l.b16 %v90
    %v334 = vunpack.c.l.b16 %v91
    %v335 = vunpack.c.l.b16 %v92
    %v336 = vunpack.c.l.b16 %v93
    %v337 = vunpack.c.l.b16 %v94
    %v338 = vunpack.c.l.b16 %v95
    %v339 = vunpack.c.l.b16 %v96
    %v340 = vunpack.c.l.b16 %v97
    %v341 = vunpack.c.l.b16 %v98
    %v342 = vunpack.c.l.b16 %v99
    %v343 = vunpack.c.l.b16 %v100
    %v344 = vunpack.c.l.b16 %v101
    %v345 = vunpack.c.l.b16 %v102
    %v346 = vunpack.c.l.b16 %v103
    %v347 = vunpack.c.l.b16 %v104
    %v348 = vunpack.c.l.b16 %v105
    %v349 = vunpack.c.l.b16 %v106
    %v350 = vunpack.c.l.b16 %v107
    %v351 = vunpack.c.l.b16 %v108
    %v352 = vunpack.c.l.b16 %v109
    %v353 = vunpack.c.l.b16 %v110
    %v354 = vunpack.c.l.b16 %v111
    %v355 = vunpack.c.l.b16 %v112
    %v356 = vunpack.c.l.b16 %v113
    %v357 = vunpack.c.l.b16 %v114
    %v358 = vunpack.c.l.b16 %v115
    %v359 = vunpack.c.l.b16 %v116
    %v360 = vunpack.c.l.b16 %v117
    %v361 = vunpack.c.l.b16 %v118
    %v362 = vunpack.c.l.b16 %v119
    %v363 = vunpack.c.l.b16 %v120
    %v364 = vunpack.c.l.b16 %v121
    %v365 = vunpack.c.l.b16 %v122
    %v366 = vunpack.c.l.b16 %v123
    %v367 = vunpack.c.l.b16 %v124
    %v368 = vunpack.c.l.b16 %v125
    %v369 = vunpack.c.l.b16 %v126
    %v370 = vunpack.c.l.b16 %v127
    %v371 = vunpack.c.l.b16 %v128
    %v372 = vunpack.c.l.b16 %v129
    %v373 = vunpack.c.l.b16 %v130
    %v374 = vunpack.c.l.b16 %v131
    %v375 = vunpack.c.l.b16 %v132
    %v376 = vunpack.c.l.b16 %v133
    %v377 = vunpack.c.l.b16 %v134
    %v378 = vunpack.c.l.b16 %v135
    %v379 = vunpack.c.l.b16 %v136
    %v380 = vunpack.c.l.b16 %v137
    %v381 = vunpack.c.l.b16 %v138
    %v382 = vunpack.c.l.b16 %v139
    %v383 = vunpack.c.l.b16 %v140
    %v384 = vunpack.c.l.b16 %v141
    %v385 = vunpack.c.l.b16 %v142
    %v386 = vunpack.c.l.b16 %v143
    %v387 = vunpack.c.l.b16 %v144
    %v388 = vunpack.c.l.b16 %v145
    %v389 = vunpack.c.l.b16 %v146
    %v390 = vpack.c.b16 %v295, %v294
    %v391 = vpack.c.b16 %v297, %v296
    %v392 = vpack.c.b16 %v299, %v298
    %v393 = vpack.c.b16 %v301, %v300
    %v394 = vpack.c.b16 %v303, %v302
    %v395 = vpack.c.b16 %v305, %v304
    %v396 = vpack.c.b16 %v307, %v306
    %v397 = vpack.c.b16 %v309, %v308
    %v398 = vpack.c.b16 %v311, %v310
    %v399 = vpack.c.b16 %v313, %v312
    %v400 = vpack.c.b16 %v315, %v314
    %v401 = vpack.c.b16 %v317, %v316
    %v402 = vpack.c.b16 %v319, %v318
    %v403 = vpack.c.b16 %v321, %v320
    %v404 = vpack.c.b16 %v323, %v322
    %v405 = vpack.c.b16 %v325, %v324
    %v406 = vpack.c.b16 %v327, %v326
    %v407 = vpack.c.b16 %v329, %v328
    %v408 = vpack.c.b16 %v331, %v330
    %v409 = vpack.c.b16 %v333, %v332
    %v410 = vpack.c.b16 %v335, %v334
    %v411 = vpack.c.b16 %v337, %v336
    %v412 = vpack.c.b16 %v339, %v338
    %v413 = vpack.c.b16 %v341, %v340
    %v414 = vpack.c.b16 %v343, %v342
    %v415 = vpack.c.b16 %v345, %v344
    %v416 = vpack.c.b16 %v347, %v346
    %v417 = vpack.c.b16 %v349, %v348
    %v418 = vpack.c.b16 %v351, %v350
    %v419 = vpack.c.b16 %v353, %v352
    %v420 = vpack.c.b16 %v355, %v354
    %v421 = vpack.c.b16 %v357, %v356
    %v422 = vpack.c.b16 %v359, %v358
    %v423 = vpack.c.b16 %v361, %v360
    %v424 = vpack.c.b16 %v363, %v362
    %v425 = vpack.c.b16 %v365, %v364
    %v426 = vpack.c.b16 %v367, %v366
    %v427 = vpack.c.b16 %v369, %v368
    %v428 = vpack.c.b16 %v371, %v370
    %v429 = vpack.c.b16 %v373, %v372
    %v430 = vpack.c.b16 %v375, %v374
    %v431 = vpack.c.b16 %v377, %v376
    %v432 = vpack.c.b16 %v379, %v378
    %v433 = vpack.c.b16 %v381, %v380
    %v434 = vpack.c.b16 %v383, %v382
    %v435 = vpack.c.b16 %v385, %v384
    %v436 = vpack.c.b16 %v387, %v386
    %v437 = vpack.c.b16 %v389, %v388
    %486 = vmatprep.subr.bf16.mxu0 0
    %487 = vmatpush1.bf16.msra.mxu0 %v397
    %488 = vmatprep.subr.bf16.mxu0 0
    %489 = vmatpush1.bf16.msra.mxu0 %v396
    %490 = vmatprep.subr.bf16.mxu0 0
    %491 = vmatpush1.bf16.msra.mxu0 %v395
    %492 = vmatprep.subr.bf16.mxu0 0
    %493 = vmatpush1.bf16.msra.mxu0 %v394
    %494 = vmatprep.subr.bf16.mxu0 0
    %495 = vmatpush1.bf16.msra.mxu0 %v393
    %496 = vmatprep.subr.bf16.mxu0 0
    %497 = vmatpush1.bf16.msra.mxu0 %v392
    %498 = vmatprep.subr.bf16.mxu0 0
    %499 = vmatpush1.bf16.msra.mxu0 %v391
    %500 = vmatprep.subr.bf16.mxu0 0
    %501 = vmatpush1.bf16.msra.mxu0 %v390
    %502 = vmatprep.subr.bf16.mxu0 0
    %503 = vmatpush2.bf16.msra.mxu0 %v405
    %504 = vmatprep.subr.bf16.mxu0 0
    %505 = vmatpush2.bf16.msra.mxu0 %v404
    %506 = vmatprep.subr.bf16.mxu0 0
    %507 = vmatpush2.bf16.msra.mxu0 %v403
    %508 = vmatprep.subr.bf16.mxu0 0
    %509 = vmatpush2.bf16.msra.mxu0 %v402
    %510 = vmatprep.subr.bf16.mxu0 0
    %511 = vmatpush2.bf16.msra.mxu0 %v401
    %512 = vmatprep.subr.bf16.mxu0 0
    %513 = vmatpush2.bf16.msra.mxu0 %v400
    %514 = vmatprep.subr.bf16.mxu0 0
    %515 = vmatpush2.bf16.msra.mxu0 %v399
    %516 = vmatprep.subr.bf16.mxu0 0
    %517 = vmatpush2.bf16.msra.mxu0 %v398
    %518 = vmatprep.mubr.bf16.mxu0 %v175
    %519 = vmatmul.mubr.bf16.gmra.mxu0 %v174
    %v520 = vpop.f32.mrf.mxu0
    %v521 = vadd.f32 0.0, %v520
    %v522 = vpop.f32.mrf.mxu0
    %v523 = vpop.f32.mrf.mxu0
    %v524 = vadd.f32 0.0, %v523
    %v525 = vpop.f32.mrf.mxu0
    %526 = vmatprep.mubr.bf16.mxu0 %v181
    %527 = vmatmul.mubr.bf16.gmra.mxu0 %v180
    %v528 = vpop.f32.mrf.mxu0
    %v529 = vadd.f32 0.0, %v528
    %v530 = vpop.f32.mrf.mxu0
    %v531 = vpop.f32.mrf.mxu0
    %v532 = vpop.f32.mrf.mxu0
    %533 = vdwg.mxu0
    %534 = vmatprep.subr.bf16.mxu0 0
    %535 = vmatpush1.bf16.msra.mxu0 %v413
    %536 = vmatprep.subr.bf16.mxu0 0
    %537 = vmatpush1.bf16.msra.mxu0 %v412
    %538 = vmatprep.subr.bf16.mxu0 0
    %539 = vmatpush1.bf16.msra.mxu0 %v411
    %540 = vmatprep.subr.bf16.mxu0 0
    %541 = vmatpush1.bf16.msra.mxu0 %v410
    %542 = vmatprep.subr.bf16.mxu0 0
    %543 = vmatpush1.bf16.msra.mxu0 %v409
    %544 = vmatprep.subr.bf16.mxu0 0
    %545 = vmatpush1.bf16.msra.mxu0 %v408
    %546 = vmatprep.subr.bf16.mxu0 0
    %547 = vmatpush1.bf16.msra.mxu0 %v407
    %548 = vmatprep.subr.bf16.mxu0 0
    %549 = vmatpush1.bf16.msra.mxu0 %v406
    %550 = vmatprep.subr.bf16.mxu0 0
    %551 = vmatpush2.bf16.msra.mxu0 %v421
    %552 = vmatprep.subr.bf16.mxu0 0
    %553 = vmatpush2.bf16.msra.mxu0 %v420
    %554 = vmatprep.subr.bf16.mxu0 0
    %555 = vmatpush2.bf16.msra.mxu0 %v419
    %556 = vmatprep.subr.bf16.mxu0 0
    %557 = vmatpush2.bf16.msra.mxu0 %v418
    %558 = vmatprep.subr.bf16.mxu0 0
    %559 = vmatpush2.bf16.msra.mxu0 %v417
    %560 = vmatprep.subr.bf16.mxu0 0
    %561 = vmatpush2.bf16.msra.mxu0 %v416
    %562 = vmatprep.subr.bf16.mxu0 0
    %563 = vmatpush2.bf16.msra.mxu0 %v415
    %564 = vmatprep.subr.bf16.mxu0 0
    %565 = vmatpush2.bf16.msra.mxu0 %v414
    %566 = vmatprep.mubr.bf16.mxu0 %v177
    %567 = vmatmul.mubr.bf16.gmra.mxu0 %v176
    %v568 = vpop.f32.mrf.mxu0
    %v569 = vadd.f32 %v521, %v568
    %v570 = vpop.f32.mrf.mxu0
    %v571 = vpop.f32.mrf.mxu0
    %v572 = vadd.f32 %v524, %v571
    %v573 = vpop.f32.mrf.mxu0
    %574 = vmatprep.mubr.bf16.mxu0 %v183
    %575 = vmatmul.mubr.bf16.gmra.mxu0 %v182
    %v576 = vpop.f32.mrf.mxu0
    %v577 = vadd.f32 %v529, %v576
    %v578 = vpop.f32.mrf.mxu0
    %v579 = vpop.f32.mrf.mxu0
    %v580 = vpop.f32.mrf.mxu0
    %581 = vdwg.mxu0
    %582 = vmatprep.subr.bf16.mxu0 0
    %583 = vmatpush1.bf16.msra.mxu0 %v429
    %584 = vmatprep.subr.bf16.mxu0 0
    %585 = vmatpush1.bf16.msra.mxu0 %v428
    %586 = vmatprep.subr.bf16.mxu0 0
    %587 = vmatpush1.bf16.msra.mxu0 %v427
    %588 = vmatprep.subr.bf16.mxu0 0
    %589 = vmatpush1.bf16.msra.mxu0 %v426
    %590 = vmatprep.subr.bf16.mxu0 0
    %591 = vmatpush1.bf16.msra.mxu0 %v425
    %592 = vmatprep.subr.bf16.mxu0 0
    %593 = vmatpush1.bf16.msra.mxu0 %v424
    %594 = vmatprep.subr.bf16.mxu0 0
    %595 = vmatpush1.bf16.msra.mxu0 %v423
    %596 = vmatprep.subr.bf16.mxu0 0
    %597 = vmatpush1.bf16.msra.mxu0 %v422
    %598 = vmatprep.subr.bf16.mxu0 0
    %599 = vmatpush2.bf16.msra.mxu0 %v437
    %600 = vmatprep.subr.bf16.mxu0 0
    %601 = vmatpush2.bf16.msra.mxu0 %v436
    %602 = vmatprep.subr.bf16.mxu0 0
    %603 = vmatpush2.bf16.msra.mxu0 %v435
    %604 = vmatprep.subr.bf16.mxu0 0
    %605 = vmatpush2.bf16.msra.mxu0 %v434
    %606 = vmatprep.subr.bf16.mxu0 0
    %607 = vmatpush2.bf16.msra.mxu0 %v433
    %608 = vmatprep.subr.bf16.mxu0 0
    %609 = vmatpush2.bf16.msra.mxu0 %v432
    %610 = vmatprep.subr.bf16.mxu0 0
    %611 = vmatpush2.bf16.msra.mxu0 %v431
    %612 = vmatprep.subr.bf16.mxu0 0
    %613 = vmatpush2.bf16.msra.mxu0 %v430
    %614 = vmatprep.mubr.bf16.mxu0 %v179
    %615 = vmatmul.mubr.bf16.gmra.mxu0 %v178
    %v616 = vpop.f32.mrf.mxu0
    %v617 = vadd.f32 %v569, %v616
    %v618 = vpop.f32.mrf.mxu0
    %v619 = vpop.f32.mrf.mxu0
    %v620 = vadd.f32 %v572, %v619
    %v621 = vpop.f32.mrf.mxu0
    %622 = vmatprep.mubr.bf16.mxu0 %v185
    %623 = vmatmul.mubr.bf16.gmra.mxu0 %v184
    %v624 = vpop.f32.mrf.mxu0
    %v625 = vadd.f32 %v577, %v624
    %v626 = vpop.f32.mrf.mxu0
    %v627 = vpop.f32.mrf.mxu0
    %v628 = vpop.f32.mrf.mxu0
    %629 = vdwg.mxu0
    %v630 = vlaneseq
    %v631 = vshrl.u32 %v630, 7
    %v632 = vlaneseq
    %v633 = vand.u32 %v632, 127
    %vm634 = vcmp.eq.s32.totalorder %v631, %v633
    %v635 = vsel %vm634, 1, 0
    %v636 = vcvt.s32.f32 %v635
    %v637 = vstv %s39
    %v638 = vmul.f32 %v637, %v636
    %v639 = vadd.f32 %v617, %v638
    %v640 = vld [vmem:[%s1] sm:$0xff]
    %641 = vset.pattern.permute.xlu0 0
    %642 = vperm.xlu0 %641, %v640
    %v643 = vpop.permute.xlu0 %642
    %vm644 = vcmp.eq.s32.totalorder %v633, %v643
    %v645 = vsel %vm644, 1, 0
    %v646 = vcvt.s32.f32 %v645
    %vm647 = vcmp.eq.s32.totalorder %v631, 0
    %v648 = vsel %vm647, %v639, 0.0
    %vm649 = vcmask 64512
    %v650 = vsel %vm649, %v648, 0.0
    %v651 = vrot.slane %v650, 4
    %v652 = vadd.f32 %v650, %v651
    %v653 = vrot.slane %v652, 2
    %v654 = vadd.f32 %v652, %v653
    %v655 = vrot.slane %v654, 1
    %v656 = vadd.f32 %v654, %v655
    %v657 = vsel %vm647, %v646, 0.0
    %vm658 = vcmask 31744
    %v659 = vsel %vm658, %v657, 0.0
    %v660 = vrot.slane %v659, 4
    %v661 = vadd.f32 %v659, %v660
    %v662 = vrot.slane %v661, 2
    %v663 = vadd.f32 %v661, %v662
    %v664 = vrot.slane %v663, 1
    %v665 = vadd.f32 %v663, %v664
    %vm666 = vcmp.eq.s32.totalorder %v633, 0
    %v667 = vsel %vm666, %v656, 0.0
    %v668 = vsel %vm649, %v667, 0.0
    %669 = vadd.xlane.f32.xlu0 %v668
    %v670 = vpop.xlane.xlu0 %669
    %v671 = vrcp.pop %v670
    %v672 = vmul.f32 1.0, %v671
    %v673 = vmul.f32 %v656, %v672
    %v674 = vmul.f32 %v665, %v672
    %v675 = vsel %vm666, %v639, 0.0
    %v676 = vsel %vm649, %v675, 0.0
    %677 = vadd.xlane.f32.xlu0 %v676
    %v678 = vpop.xlane.xlu0 %677
    %v679 = vsel %vm647, 0.0, %v678
    %v680 = vmul.f32 %v679, %v673
    %v681 = vsub.f32 %v639, %v680
    %v682 = vsel %vm647, 1, 0
    %vm683 = vcmp.eq.s32.totalorder %v682, 1
    %v684 = vsel %vm683, %v673, %v681
    %v685 = vmul.f32 %v679, %v674
    %v686 = vsub.f32 %v646, %v685
    %v687 = vsel %vm683, %v674, %v686
    %vm688 = vcmp.eq.s32.totalorder %v631, 1
    %v689 = vsel %vm688, %v684, 0.0
    %v690 = vsel %vm649, %v689, 0.0
    %v691 = vrot.slane %v690, 4
    %v692 = vadd.f32 %v690, %v691
    %v693 = vrot.slane %v692, 2
    %v694 = vadd.f32 %v692, %v693
    %v695 = vrot.slane %v694, 1
    %v696 = vadd.f32 %v694, %v695
    %v697 = vsel %vm688, %v687, 0.0
    %v698 = vsel %vm658, %v697, 0.0
    %v699 = vrot.slane %v698, 4
    %v700 = vadd.f32 %v698, %v699
    %v701 = vrot.slane %v700, 2
    %v702 = vadd.f32 %v700, %v701
    %v703 = vrot.slane %v702, 1
    %v704 = vadd.f32 %v702, %v703
    %vm705 = vcmp.eq.s32.totalorder %v633, 1
    %v706 = vsel %vm705, %v696, 0.0
    %v707 = vsel %vm649, %v706, 0.0
    %708 = vadd.xlane.f32.xlu0 %v707
    %v709 = vpop.xlane.xlu0 %708
    %v710 = vrcp.pop %v709
    %v711 = vmul.f32 1.0, %v710
    %v712 = vmul.f32 %v696, %v711
    %v713 = vmul.f32 %v704, %v711
    %v714 = vsel %vm705, %v684, 0.0
    %v715 = vsel %vm649, %v714, 0.0
    %716 = vadd.xlane.f32.xlu0 %v715
    %v717 = vpop.xlane.xlu0 %716
    %v718 = vsel %vm688, 0.0, %v717
    %v719 = vmul.f32 %v718, %v712
    %v720 = vsub.f32 %v684, %v719
    %v721 = vsel %vm688, 1, 0
    %vm722 = vcmp.eq.s32.totalorder %v721, 1
    %v723 = vsel %vm722, %v712, %v720
    %v724 = vmul.f32 %v718, %v713
    %v725 = vsub.f32 %v687, %v724
    %v726 = vsel %vm722, %v713, %v725
    %vm727 = vcmp.eq.s32.totalorder %v631, 2
    %v728 = vsel %vm727, %v723, 0.0
    %v729 = vsel %vm649, %v728, 0.0
    %v730 = vrot.slane %v729, 4
    %v731 = vadd.f32 %v729, %v730
    %v732 = vrot.slane %v731, 2
    %v733 = vadd.f32 %v731, %v732
    %v734 = vrot.slane %v733, 1
    %v735 = vadd.f32 %v733, %v734
    %v736 = vsel %vm727, %v726, 0.0
    %v737 = vsel %vm658, %v736, 0.0
    %v738 = vrot.slane %v737, 4
    %v739 = vadd.f32 %v737, %v738
    %v740 = vrot.slane %v739, 2
    %v741 = vadd.f32 %v739, %v740
    %v742 = vrot.slane %v741, 1
    %v743 = vadd.f32 %v741, %v742
    %vm744 = vcmp.eq.s32.totalorder %v633, 2
    %v745 = vsel %vm744, %v735, 0.0
    %v746 = vsel %vm649, %v745, 0.0
    %747 = vadd.xlane.f32.xlu0 %v746
    %v748 = vpop.xlane.xlu0 %747
    %v749 = vrcp.pop %v748
    %v750 = vmul.f32 1.0, %v749
    %v751 = vmul.f32 %v735, %v750
    %v752 = vmul.f32 %v743, %v750
    %v753 = vsel %vm744, %v723, 0.0
    %v754 = vsel %vm649, %v753, 0.0
    %755 = vadd.xlane.f32.xlu0 %v754
    %v756 = vpop.xlane.xlu0 %755
    %v757 = vsel %vm727, 0.0, %v756
    %v758 = vmul.f32 %v757, %v751
    %v759 = vsub.f32 %v723, %v758
    %v760 = vsel %vm727, 1, 0
    %vm761 = vcmp.eq.s32.totalorder %v760, 1
    %v762 = vsel %vm761, %v751, %v759
    %v763 = vmul.f32 %v757, %v752
    %v764 = vsub.f32 %v726, %v763
    %v765 = vsel %vm761, %v752, %v764
    %vm766 = vcmp.eq.s32.totalorder %v631, 3
    %v767 = vsel %vm766, %v762, 0.0
    %v768 = vsel %vm649, %v767, 0.0
    %v769 = vrot.slane %v768, 4
    %v770 = vadd.f32 %v768, %v769
    %v771 = vrot.slane %v770, 2
    %v772 = vadd.f32 %v770, %v771
    %v773 = vrot.slane %v772, 1
    %v774 = vadd.f32 %v772, %v773
    %v775 = vsel %vm766, %v765, 0.0
    %v776 = vsel %vm658, %v775, 0.0
    %v777 = vrot.slane %v776, 4
    %v778 = vadd.f32 %v776, %v777
    %v779 = vrot.slane %v778, 2
    %v780 = vadd.f32 %v778, %v779
    %v781 = vrot.slane %v780, 1
    %v782 = vadd.f32 %v780, %v781
    %vm783 = vcmp.eq.s32.totalorder %v633, 3
    %v784 = vsel %vm783, %v774, 0.0
    %v785 = vsel %vm649, %v784, 0.0
    %786 = vadd.xlane.f32.xlu0 %v785
    %v787 = vpop.xlane.xlu0 %786
    %v788 = vrcp.pop %v787
    %v789 = vmul.f32 1.0, %v788
    %v790 = vmul.f32 %v774, %v789
    %v791 = vmul.f32 %v782, %v789
    %v792 = vsel %vm783, %v762, 0.0
    %v793 = vsel %vm649, %v792, 0.0
    %794 = vadd.xlane.f32.xlu0 %v793
    %v795 = vpop.xlane.xlu0 %794
    %v796 = vsel %vm766, 0.0, %v795
    %v797 = vmul.f32 %v796, %v790
    %v798 = vsub.f32 %v762, %v797
    %v799 = vsel %vm766, 1, 0
    %vm800 = vcmp.eq.s32.totalorder %v799, 1
    %v801 = vsel %vm800, %v790, %v798
    %v802 = vmul.f32 %v796, %v791
    %v803 = vsub.f32 %v765, %v802
    %v804 = vsel %vm800, %v791, %v803
    %vm805 = vcmp.eq.s32.totalorder %v631, 4
    %v806 = vsel %vm805, %v801, 0.0
    %v807 = vsel %vm649, %v806, 0.0
    %v808 = vrot.slane %v807, 4
    %v809 = vadd.f32 %v807, %v808
    %v810 = vrot.slane %v809, 2
    %v811 = vadd.f32 %v809, %v810
    %v812 = vrot.slane %v811, 1
    %v813 = vadd.f32 %v811, %v812
    %v814 = vsel %vm805, %v804, 0.0
    %v815 = vsel %vm658, %v814, 0.0
    %v816 = vrot.slane %v815, 4
    %v817 = vadd.f32 %v815, %v816
    %v818 = vrot.slane %v817, 2
    %v819 = vadd.f32 %v817, %v818
    %v820 = vrot.slane %v819, 1
    %v821 = vadd.f32 %v819, %v820
    %vm822 = vcmp.eq.s32.totalorder %v633, 4
    %v823 = vsel %vm822, %v813, 0.0
    %v824 = vsel %vm649, %v823, 0.0
    %825 = vadd.xlane.f32.xlu0 %v824
    %v826 = vpop.xlane.xlu0 %825
    %v827 = vrcp.pop %v826
    %v828 = vmul.f32 1.0, %v827
    %v829 = vmul.f32 %v813, %v828
    %v830 = vmul.f32 %v821, %v828
    %v831 = vsel %vm822, %v801, 0.0
    %v832 = vsel %vm649, %v831, 0.0
    %833 = vadd.xlane.f32.xlu0 %v832
    %v834 = vpop.xlane.xlu0 %833
    %v835 = vsel %vm805, 0.0, %v834
    %v836 = vmul.f32 %v835, %v829
    %v837 = vsub.f32 %v801, %v836
    %v838 = vsel %vm805, 1, 0
    %vm839 = vcmp.eq.s32.totalorder %v838, 1
    %v840 = vsel %vm839, %v829, %v837
    %v841 = vmul.f32 %v835, %v830
    %v842 = vsub.f32 %v804, %v841
    %v843 = vsel %vm839, %v830, %v842
    %vm844 = vcmp.eq.s32.totalorder %v631, 5
    %v845 = vsel %vm844, %v840, 0.0
    %v846 = vsel %vm649, %v845, 0.0
    %v847 = vrot.slane %v846, 4
    %v848 = vadd.f32 %v846, %v847
    %v849 = vrot.slane %v848, 2
    %v850 = vadd.f32 %v848, %v849
    %v851 = vrot.slane %v850, 1
    %v852 = vadd.f32 %v850, %v851
    %v853 = vsel %vm844, %v843, 0.0
    %v854 = vsel %vm658, %v853, 0.0
    %v855 = vrot.slane %v854, 4
    %v856 = vadd.f32 %v854, %v855
    %v857 = vrot.slane %v856, 2
    %v858 = vadd.f32 %v856, %v857
    %v859 = vrot.slane %v858, 1
    %v860 = vadd.f32 %v858, %v859
    %vm861 = vcmp.eq.s32.totalorder %v633, 5
    %v862 = vsel %vm861, %v852, 0.0
    %v863 = vsel %vm649, %v862, 0.0
    %864 = vadd.xlane.f32.xlu0 %v863
    %v865 = vpop.xlane.xlu0 %864
    %v866 = vrcp.pop %v865
    %v867 = vmul.f32 1.0, %v866
    %v868 = vmul.f32 %v852, %v867
    %v869 = vmul.f32 %v860, %v867
    %v870 = vsel %vm861, %v840, 0.0
    %v871 = vsel %vm649, %v870, 0.0
    %872 = vadd.xlane.f32.xlu0 %v871
    %v873 = vpop.xlane.xlu0 %872
    %v874 = vsel %vm844, 0.0, %v873
    %v875 = vmul.f32 %v874, %v868
    %v876 = vsub.f32 %v840, %v875
    %v877 = vsel %vm844, 1, 0
    %vm878 = vcmp.eq.s32.totalorder %v877, 1
    %v879 = vsel %vm878, %v868, %v876
    %v880 = vmul.f32 %v874, %v869
    %v881 = vsub.f32 %v843, %v880
    %v882 = vsel %vm878, %v869, %v881
    %vm883 = vcmp.eq.s32.totalorder %v631, 6
    %v884 = vsel %vm883, %v879, 0.0
    %v885 = vsel %vm649, %v884, 0.0
    %v886 = vrot.slane %v885, 4
    %v887 = vadd.f32 %v885, %v886
    %v888 = vrot.slane %v887, 2
    %v889 = vadd.f32 %v887, %v888
    %v890 = vrot.slane %v889, 1
    %v891 = vadd.f32 %v889, %v890
    %v892 = vsel %vm883, %v882, 0.0
    %v893 = vsel %vm658, %v892, 0.0
    %v894 = vrot.slane %v893, 4
    %v895 = vadd.f32 %v893, %v894
    %v896 = vrot.slane %v895, 2
    %v897 = vadd.f32 %v895, %v896
    %v898 = vrot.slane %v897, 1
    %v899 = vadd.f32 %v897, %v898
    %vm900 = vcmp.eq.s32.totalorder %v633, 6
    %v901 = vsel %vm900, %v891, 0.0
    %v902 = vsel %vm649, %v901, 0.0
    %903 = vadd.xlane.f32.xlu0 %v902
    %v904 = vpop.xlane.xlu0 %903
    %v905 = vrcp.pop %v904
    %v906 = vmul.f32 1.0, %v905
    %v907 = vmul.f32 %v891, %v906
    %v908 = vmul.f32 %v899, %v906
    %v909 = vsel %vm900, %v879, 0.0
    %v910 = vsel %vm649, %v909, 0.0
    %911 = vadd.xlane.f32.xlu0 %v910
    %v912 = vpop.xlane.xlu0 %911
    %v913 = vsel %vm883, 0.0, %v912
    %v914 = vmul.f32 %v913, %v907
    %v915 = vsub.f32 %v879, %v914
    %v916 = vsel %vm883, 1, 0
    %vm917 = vcmp.eq.s32.totalorder %v916, 1
    %v918 = vsel %vm917, %v907, %v915
    %v919 = vmul.f32 %v913, %v908
    %v920 = vsub.f32 %v882, %v919
    %v921 = vsel %vm917, %v908, %v920
    %vm922 = vcmp.eq.s32.totalorder %v631, 7
    %v923 = vsel %vm922, %v918, 0.0
    %v924 = vsel %vm649, %v923, 0.0
    %v925 = vrot.slane %v924, 4
    %v926 = vadd.f32 %v924, %v925
    %v927 = vrot.slane %v926, 2
    %v928 = vadd.f32 %v926, %v927
    %v929 = vrot.slane %v928, 1
    %v930 = vadd.f32 %v928, %v929
    %v931 = vsel %vm922, %v921, 0.0
    %v932 = vsel %vm658, %v931, 0.0
    %v933 = vrot.slane %v932, 4
    %v934 = vadd.f32 %v932, %v933
    %v935 = vrot.slane %v934, 2
    %v936 = vadd.f32 %v934, %v935
    %v937 = vrot.slane %v936, 1
    %v938 = vadd.f32 %v936, %v937
    %vm939 = vcmp.eq.s32.totalorder %v633, 7
    %v940 = vsel %vm939, %v930, 0.0
    %v941 = vsel %vm649, %v940, 0.0
    %942 = vadd.xlane.f32.xlu0 %v941
    %v943 = vpop.xlane.xlu0 %942
    %v944 = vrcp.pop %v943
    %v945 = vmul.f32 1.0, %v944
    %v946 = vmul.f32 %v938, %v945
    %v947 = vsel %vm939, %v918, 0.0
    %v948 = vsel %vm649, %v947, 0.0
    %949 = vadd.xlane.f32.xlu0 %v948
    %v950 = vpop.xlane.xlu0 %949
    %v951 = vsel %vm922, 0.0, %v950
    %v952 = vmul.f32 %v951, %v946
    %v953 = vsub.f32 %v921, %v952
    %v954 = vsel %vm922, 1, 0
    %vm955 = vcmp.eq.s32.totalorder %v954, 1
    %v956 = vsel %vm955, %v946, %v953
    %v958 = vsel %vm649, %v620, 0
    %v961 = vsel %vm649, %v625, 0
    %963 = vmatprep.subr.mxu0 0.0
    %964 = vmatpush1.msra.mxu0 0.0
    %965 = vmatprep.subr.mxu0 0.0
    %966 = vmatpush1.msra.mxu0 0.0
    %967 = vmatprep.subr.mxu0 0.0
    %968 = vmatpush1.msra.mxu0 0.0
    %969 = vmatprep.subr.mxu0 0.0
    %970 = vmatpush1.msra.mxu0 0.0
    %971 = vmatprep.subr.mxu0 0.0
    %972 = vmatpush1.msra.mxu0 0.0
    %973 = vmatprep.subr.mxu0 0.0
    %974 = vmatpush1.msra.mxu0 0.0
    %975 = vmatprep.subr.mxu0 0.0
    %976 = vmatpush1.msra.mxu0 0.0
    %977 = vmatprep.subr.mxu0 0.0
    %978 = vmatpush1.msra.mxu0 0.0
    %979 = vmatprep.subr.mxu0 0.0
    %980 = vmatpush1.msra.mxu0 0.0
    %981 = vmatprep.subr.mxu0 0.0
    %982 = vmatpush1.msra.mxu0 0.0
    %983 = vmatprep.subr.mxu0 0.0
    %984 = vmatpush1.msra.mxu0 0.0
    %985 = vmatprep.subr.mxu0 0.0
    %986 = vmatpush1.msra.mxu0 0.0
    %987 = vmatprep.subr.mxu0 0.0
    %988 = vmatpush1.msra.mxu0 0.0
    %989 = vmatprep.subr.mxu0 0.0
    %990 = vmatpush1.msra.mxu0 0.0
    %991 = vmatprep.subr.mxu0 0.0
    %992 = vmatpush1.msra.mxu0 0.0
    %993 = vmatprep.subr.mxu0 0.0
    %994 = vmatpush1.msra.mxu0 %v956
    %995 = vmatprep.subr.mxu0 0.0
    %996 = vmatpush2.msra.mxu0 0.0
    %997 = vmatprep.subr.mxu0 0.0
    %998 = vmatpush2.msra.mxu0 0.0
    %999 = vmatprep.subr.mxu0 0.0
    %1000 = vmatpush2.msra.mxu0 0.0
    %1001 = vmatprep.subr.mxu0 0.0
    %1002 = vmatpush2.msra.mxu0 0.0
    %1003 = vmatprep.subr.mxu0 0.0
    %1004 = vmatpush2.msra.mxu0 0.0
    %1005 = vmatprep.subr.mxu0 0.0
    %1006 = vmatpush2.msra.mxu0 0.0
    %1007 = vmatprep.subr.mxu0 0.0
    %1008 = vmatpush2.msra.mxu0 0.0
    %1009 = vmatprep.subr.mxu0 0.0
    %1010 = vmatpush2.msra.mxu0 0.0
    %1011 = vmatprep.subr.mxu0 0.0
    %1012 = vmatpush2.msra.mxu0 0.0
    %1013 = vmatprep.subr.mxu0 0.0
    %1014 = vmatpush2.msra.mxu0 0.0
    %1015 = vmatprep.subr.mxu0 0.0
    %1016 = vmatpush2.msra.mxu0 0.0
    %1017 = vmatprep.subr.mxu0 0.0
    %1018 = vmatpush2.msra.mxu0 0.0
    %1019 = vmatprep.subr.mxu0 0.0
    %1020 = vmatpush2.msra.mxu0 0.0
    %1021 = vmatprep.subr.mxu0 0.0
    %1022 = vmatpush2.msra.mxu0 0.0
    %1023 = vmatprep.subr.mxu0 0.0
    %1024 = vmatpush2.msra.mxu0 0.0
    %1025 = vmatprep.subr.mxu0 0.0
    %1026 = vmatpush2.msra.mxu0 0.0
    %1027 = vmatprep.mubr.f32.mxu0 0.0
    %1028 = vmatmul.mubr.f32.gmra.mxu0 %v958
    %v1029 = vpop.f32.mrf.mxu0
    %v1030 = vadd.f32 0.0, %v1029
    %v1031 = vpop.f32.mrf.mxu0
    %1032 = vmatprep.mubr.f32.mxu0 0.0
    %1033 = vmatmul.mubr.f32.gmra.mxu0 %v961
    %v1034 = vpop.f32.mrf.mxu0
    %v1035 = vadd.f32 0.0, %v1034
    %v1036 = vpop.f32.mrf.mxu0
    %1037 = vdwg.mxu0
    %v1038 = vstv %s40
    %v1039 = vmul.f32 %v1038, %v1030
    %v1040 = vmul.f32 %v1038, %v1035
    %v1041 = vstv %s41
    %v1042 = vadd.f32 %v1039, %v1041
    %v1043 = vadd.f32 %v1040, %v1041
    %v1044 = vsel %vm658, %v1042, -inf
    %1045 = vmax.xlane.f32.xlu0 %v1044
    %v1046 = vpop.xlane.xlu0 %1045
    %v1047 = vsel %vm658, %v1043, -inf
    %1048 = vmax.xlane.f32.xlu0 %v1047
    %v1049 = vpop.xlane.xlu0 %1048
    %v1050 = vsub.f32 %v1042, %v1046
    %v1051 = vsub.f32 %v1043, %v1049
    %v1052 = vmul.f32 %v1050, 1.442695
    %v1053 = vpow.pop %v1052
    %v1054 = vmul.f32 %v1051, 1.442695
    %v1055 = vpow.pop %v1054
    %v1056 = vsel %vm658, %v1053, 0.0
    %1057 = vadd.xlane.f32.xlu0 %v1056
    %v1058 = vpop.xlane.xlu0 %1057
    %v1059 = vsel %vm658, %v1055, 0.0
    %1060 = vadd.xlane.f32.xlu0 %v1059
    %v1061 = vpop.xlane.xlu0 %1060
    %v1062 = vlog2.pop %v1058
    %v1063 = vmul.f32 %v1062, 0.6931472
    %v1064 = vlog2.pop %v1061
    %v1065 = vmul.f32 %v1064, 0.6931472
    %v1066 = vadd.f32 %v1046, %v1063
    %v1067 = vadd.f32 %v1049, %v1065
    %v1068 = vsub.f32 %v1042, %v1066
    %v1069 = vsub.f32 %v1043, %v1067
    %1070 = vst.msk [vmem:[%s5] sm:$0xff] %vm658, %v1068
    %1071 = vst.msk [vmem:[%s5 + $0x8] sm:$0xff] %vm658, %v1069
    %v1072 = vld [vmem:[%s2] sm:$0xff]
    %v1073 = vld [vmem:[%s2 + $0x8] sm:$0xff]
    %1074 = vset.pattern.permute.xlu0 0
    %1075 = vperm.xlu0 %1074, %v1072
    %v1076 = vpop.permute.xlu0 %1075
    %1077 = vset.pattern.permute.xlu0 0
    %1078 = vperm.xlu0 %1077, %v1073
    %v1079 = vpop.permute.xlu0 %1078
    %vm1080 = vcmp.eq.s32.totalorder %v633, %v1076
    %vm1081 = vcmp.eq.s32.totalorder %v633, %v1079
    %v1082 = vsel %vm1080, 1, 0
    %v1083 = vsel %vm1081, 1, 0
    %v1084 = vcvt.s32.f32 %v1082
    %v1085 = vcvt.s32.f32 %v1083
    %v1086 = vmul.f32 %v1084, %v1068
    %v1087 = vmul.f32 %v1085, %v1069
    %v1088 = vsel %vm658, %v1086, 0.0
    %1089 = vadd.xlane.f32.xlu0 %v1088
    %v1090 = vpop.xlane.xlu0 %1089
    %v1091 = vsel %vm658, %v1087, 0.0
    %1092 = vadd.xlane.f32.xlu0 %v1091
    %v1093 = vpop.xlane.xlu0 %1092
    %v1094 = vsub.f32 0.0, %v1090
    %v1095 = vsub.f32 0.0, %v1093
    %v1096 = vadd.f32 %v1094, %v1095
    %v1097 = vrot.slane %v1096, 4
    %v1098 = vadd.f32 %v1096, %v1097
    %v1099 = vrot.slane %v1098, 2
    %v1100 = vadd.f32 %v1098, %v1099
    %v1101 = vrot.slane %v1100, 1
    %v1102 = vadd.f32 %v1100, %v1101
    %v1103 = vmul.f32 %v1102, 0.0625
    %vm1104 = vcmask 0
    %1105 = vst.msk [vmem:[#allocation5] sm:$0x1] %vm1104, %v1103
    %v1106 = vcvt.s32.f32 %v633
    %vm1107 = vcmp.ge.f32.partialorder %v1042, %v1046
    %vm1108 = vcmp.ge.f32.partialorder %v1043, %v1049
    %v1109 = vsel %vm1107, %v1106, 4.0
    %v1110 = vsel %vm1108, %v1106, 4.0
    %v1111 = vsel %vm658, %v1109, inf
    %1112 = vmin.xlane.f32.xlu0 %v1111
    %v1113 = vpop.xlane.xlu0 %1112
    %v1114 = vsel %vm658, %v1110, inf
    %1115 = vmin.xlane.f32.xlu0 %v1114
    %v1116 = vpop.xlane.xlu0 %1115
    %v1117 = vcvt.s32.f32 %v1072
    %v1118 = vcvt.s32.f32 %v1073
    %vm1119 = vcmp.eq.f32.partialorder %v1113, %v1117
    %vm1120 = vcmp.eq.f32.partialorder %v1116, %v1118
    %v1121 = vsel %vm1119, 1, 0
    %v1122 = vsel %vm1120, 1, 0
    %v1123 = vcvt.s32.f32 %v1121
    %v1124 = vcvt.s32.f32 %v1122
    %vm1125 = vcmask 7168
    %v1126 = vsel %vm1125, %v1123, 0.0
    %v1127 = vsel %vm1125, %v1124, 0.0
    %v1128 = vadd.f32 %v1126, %v1127
    %v1129 = vrot.slane %v1128, 4
    %v1130 = vadd.f32 %v1128, %v1129
    %v1131 = vrot.slane %v1130, 2
    %v1132 = vadd.f32 %v1130, %v1131
    %v1133 = vrot.slane %v1132, 1
    %v1134 = vadd.f32 %v1132, %v1133
    %v1135 = vmul.f32 %v1134, 0.0625
    %1136 = vst.msk [vmem:[#allocation6] sm:$0x1] %vm1104, %v1135
    // Predicated region
    $region26: #{_forward_jit.1} parent=1 // pred_check
      _
    $region27: #{_forward_jit.1} parent=1 // pred_check_branch
      %1138 = sbr.rel (0) target = $region29
    $region28: #{_forward_jit.1} parent=1 // pred_region
      _
    $region29: #{_forward_jit.1} parent=1 // pred_fallthru
      _
    // Predicated region
    $region30: #{_forward_jit.1} parent=1 // pred_check
      _
    $region31: #{_forward_jit.1} parent=1 // pred_check_branch
      %1140 = sbr.rel (0) target = $region33
    $region32: #{_forward_jit.1} parent=1 // pred_region
      %s1142 = ssub.s32 16, 16
      %1143 = vsyncadd [#allocation3], %s1142
      %s1145 = sshll.u32 [#allocation5], 4
      %s1146 = int_to_ptr.vmem [resolvable:$true] %s1145
      %1148 = dma.vmem_to_hbm [thread:$0]  %s1146, 16, %s6, [#allocation3]
    $region33: #{_forward_jit.1} parent=1 // pred_fallthru
      _
    // Predicated region
    $region34: #{_forward_jit.1} parent=1 // pred_check
      _
    $region35: #{_forward_jit.1} parent=1 // pred_check_branch
      %1150 = sbr.rel (0) target = $region37
    $region36: #{_forward_jit.1} parent=1 // pred_region
      %s1152 = ssub.s32 16, 16
      %1153 = vsyncadd [#allocation7], %s1152
      %s1155 = sshll.u32 [#allocation6], 4
      %s1156 = int_to_ptr.vmem [resolvable:$true] %s1155
      %1158 = dma.vmem_to_hbm [thread:$0]  %s1156, 16, %s7, [#allocation7]
    $region37: #{_forward_jit.1} parent=1 // pred_fallthru
      _
    // Predicated region
    $region38: #{_forward_jit.1} parent=1 // pred_check
      _
    $region39: #{_forward_jit.1} parent=1 // pred_check_branch
      %1160 = sbr.rel (0) target = $region41
    $region40: #{_forward_jit.1} parent=1 // pred_region
      _
    $region41: #{_forward_jit.1} parent=1 // pred_fallthru
      _
    // Predicated region
    $region42: #{_forward_jit.1} parent=1 // pred_check
      _
    $region43: #{_forward_jit.1} parent=1 // pred_check_branch
      %1162 = sbr.rel (0) target = $region45
    $region44: #{_forward_jit.1} parent=1 // pred_region
      %1163 = dma.done [#allocation3], 16
    $region45: #{_forward_jit.1} parent=1 // pred_fallthru
      _
    // Predicated region
    $region46: #{_forward_jit.1} parent=1 // pred_check
      _
    $region47: #{_forward_jit.1} parent=1 // pred_check_branch
      %1165 = sbr.rel (0) target = $region49
    $region48: #{_forward_jit.1} parent=1 // pred_region
      %1166 = dma.done [#allocation7], 16
    $region49: #{_forward_jit.1} parent=1 // pred_fallthru
      _
    %1167 = vsyncpa [#allocation3], 1
    %1168 = vsyncpa [#allocation7], 1
    %1169 = vsyncpa [#allocation4], 1

</llo_original>
